<compile_context>
chip_gen: v6e
topology: v6e:2x2x1
jax: 0.10.0
libtpu: 0.0.40
codegen_flags: <defaults>
</compile_context>

<pallas_src>
import functools

import jax
import jax.numpy as jnp
from jax.experimental import pallas as pl
from jax.experimental.pallas import tpu as pltpu

# ---------------- synthetic (small) configuration ----------------
BATCH = 8
IN_CH = 3
IMG = 32
KH = KW = 7
STRIDE = 2
OUT_HW = IMG // STRIDE                   # output side of the 7x7 / stride-2 / pad-3 conv
SPATIAL = OUT_HW * OUT_HW                # 256 spatial positions per image
M_ROWS = BATCH * SPATIAL                 # 2048 im2col rows per view
K_REAL = IN_CH * KH * KW                 # 147 contraction size (NOT padded in XLA)
CONV_OUT = 64                            # resnet conv1 output channels (logical)
CONV_PAD = 128                           # zero-padded conv channels (lane dense)
FEAT_DIM = 128                           # stand-in for resnet18's 512-d backbone feature
PROJ_SIZES = [FEAT_DIM, 128, 128, 128]   # projector "128-128-128"
NUM_HIDDEN = len(PROJ_SIZES) - 2
NUM_FEATURES = PROJ_SIZES[-1]
SIM_COEFF, STD_COEFF, COV_COEFF = 25.0, 25.0, 1.0
BN_EPS = 1e-5

NUM_VIEWS = 2
TM = 512                                 # im2col rows per grid step (whole images only)
assert TM % SPATIAL == 0 and M_ROWS % TM == 0
IMGS_PER_TILE = TM // SPATIAL            # 2 images per tile
N_MTILES = M_ROWS // TM                  # 4 M-tiles per view


def _full_spec(shape):
    """Whole-array block, constant block index (DMA'd once, stays VMEM-resident)."""
    return pl.BlockSpec(shape, lambda v, m, _n=len(shape): (0,) * _n)


# ============================ fused Pallas kernel ============================

def _vicreg_kernel(p_ref, cw_ref, hw_ref, *rest, num_hidden):
    """grid = (view, m_tile).  Per step: conv1 im2col matmul tile -> ReLU -> partial
    global-avg-pool into a VMEM accumulator.  At the last m-tile of each view: head
    linear into a persistent feats scratch.  At the very last grid step: shared
    projector (Linear -> BN(train) -> ReLU x2 -> Linear) + full VICReg loss."""
    n_proj = 3 * num_hidden + 1
    proj_refs = rest[:n_proj]
    o_ref = rest[n_proj]
    pooled_ref = rest[n_proj + 1]        # (BATCH, CONV_PAD) f32, per-view accumulator
    feats_ref = rest[n_proj + 2]         # (2*BATCH, FEAT_DIM) f32, persists across views

    v = pl.program_id(0)
    m = pl.program_id(1)
    last_m = pl.num_programs(1) - 1

    # ---- conv1 tile: (TM, K_REAL) bf16 x (K_REAL, CONV_PAD) bf16, f32 accumulate ----
    h = jnp.dot(p_ref[0], cw_ref[0], preferred_element_type=jnp.float32)    # (TM, 128)
    h = jnp.maximum(h, 0.0)                                                 # ReLU

    # Partial global-avg-pool for the IMGS_PER_TILE whole images in this tile, scattered
    # into the (BATCH, CONV_PAD) accumulator with a static one-hot mask (no dynamic
    # sublane stores needed).
    part = jnp.mean(h.reshape(IMGS_PER_TILE, SPATIAL, CONV_PAD), axis=1)    # (IPT, 128)
    row_ids = jax.lax.broadcasted_iota(jnp.int32, (BATCH, CONV_PAD), 0)
    base = m * IMGS_PER_TILE
    upd = jnp.zeros((BATCH, CONV_PAD), jnp.float32)
    for j in range(IMGS_PER_TILE):
        upd = upd + jnp.where(row_ids == base + j, part[j:j + 1, :], 0.0)

    @pl.when(m == 0)
    def _():
        pooled_ref[...] = jnp.zeros_like(pooled_ref)

    pooled_ref[...] += upd

    # ---- per-view head: linear on the pooled features; feats stay in VMEM ----
    @pl.when((m == last_m) & (v == 0))
    def _():
        feats_ref[0:BATCH, :] = jnp.dot(pooled_ref[...], hw_ref[0],
                                        preferred_element_type=jnp.float32)

    # ---- last view: head + shared projector + VICReg loss, all fused ----
    @pl.when((m == last_m) & (v == NUM_VIEWS - 1))
    def _():
        feats_ref[BATCH:2 * BATCH, :] = jnp.dot(pooled_ref[...], hw_ref[0],
                                                preferred_element_type=jnp.float32)
        n = BATCH
        h2 = feats_ref[...]                                                 # (2n, FEAT_DIM)

        # Hidden layers: Linear(bias=False) -> BatchNorm1d (training, per-view stats) -> ReLU.
        for li in range(num_hidden):
            w_ref, g_ref, b_ref = proj_refs[3 * li: 3 * li + 3]
            hlin = jnp.dot(h2, w_ref[...], preferred_element_type=jnp.float32)
            d = hlin.shape[1]
            h3 = hlin.reshape(2, n, d)                                      # per-view stats
            mu = jnp.mean(h3, axis=1, keepdims=True)
            var = jnp.mean((h3 - mu) ** 2, axis=1, keepdims=True)           # biased (BN train)
            hn = (h3 - mu) * jax.lax.rsqrt(var + BN_EPS)
            h2 = jnp.maximum(hn * g_ref[...] + b_ref[...], 0.0).reshape(2 * n, d)

        wf_ref = proj_refs[3 * num_hidden]
        z = jnp.dot(h2, wf_ref[...], preferred_element_type=jnp.float32)    # (2n, D)
        zx = z[:n]
        zy = z[n:]

        # F.mse_loss (mean over all elements)
        diff = zx - zy
        repr_loss = jnp.mean(diff * diff)

        # FullGatherLayer / dist.all_gather is the identity for world_size == 1.
        xm = zx - jnp.mean(zx, axis=0, keepdims=True)
        ym = zy - jnp.mean(zy, axis=0, keepdims=True)

        inv_nm1 = 1.0 / (n - 1)                      # torch.var (N-1) == cov (batch-1) here
        var_x = jnp.sum(xm * xm, axis=0, keepdims=True) * inv_nm1           # (1, D)
        var_y = jnp.sum(ym * ym, axis=0, keepdims=True) * inv_nm1
        std_x = jnp.sqrt(var_x + 1.0e-4)
        std_y = jnp.sqrt(var_y + 1.0e-4)
        std_loss = (jnp.mean(jnp.maximum(1.0 - std_x, 0.0)) * 0.5
                    + jnp.mean(jnp.maximum(1.0 - std_y, 0.0)) * 0.5)

        # covariance: cov = x^T x / (batch_size - 1); sum of squared off-diagonals.
        dn = (((0,), (0,)), ((), ()))
        cov_x = jax.lax.dot_general(xm, xm, dn, preferred_element_type=jnp.float32) * inv_nm1
        cov_y = jax.lax.dot_general(ym, ym, dn, preferred_element_type=jnp.float32) * inv_nm1
        ri = jax.lax.broadcasted_iota(jnp.int32, (NUM_FEATURES, NUM_FEATURES), 0)
        ci = jax.lax.broadcasted_iota(jnp.int32, (NUM_FEATURES, NUM_FEATURES), 1)
        offd = (ri != ci).astype(jnp.float32)                               # exact off_diagonal
        cov_loss = (jnp.sum((cov_x * offd) ** 2)
                    + jnp.sum((cov_y * offd) ** 2)) / NUM_FEATURES

        o_ref[0, 0] = SIM_COEFF * repr_loss + STD_COEFF * std_loss + COV_COEFF * cov_loss


# ============================ pallas_call wrapper ============================

def vicreg_fused(patches, conv_w, head_w, proj_params):
    """Both backbones + shared projector + loss in ONE pallas_call."""
    hidden = proj_params["hidden"]
    final_w = proj_params["final_w"]

    args = [patches, conv_w, head_w]
    in_specs = [
        pl.BlockSpec((1, TM, K_REAL), lambda v, m: (v, m, 0)),              # patch M-tiles
        pl.BlockSpec((1, K_REAL, CONV_PAD), lambda v, m: (v, 0, 0)),        # per-view conv1
        pl.BlockSpec((1, CONV_PAD, FEAT_DIM), lambda v, m: (v, 0, 0)),      # per-view head
    ]
    for (w, g, b) in hidden:
        args += [w, g, b]
        in_specs += [_full_spec(w.shape), _full_spec(g.shape), _full_spec(b.shape)]
    args.append(final_w)
    in_specs.append(_full_spec(final_w.shape))

    kernel = functools.partial(_vicreg_kernel, num_hidden=len(hidden))
    out = pl.pallas_call(
        kernel,
        grid=(NUM_VIEWS, N_MTILES),
        in_specs=in_specs,
        out_specs=pl.BlockSpec(memory_space=pltpu.SMEM),
        out_shape=jax.ShapeDtypeStruct((1, 1), jnp.float32),
        scratch_shapes=[
            pltpu.VMEM((BATCH, CONV_PAD), jnp.float32),                     # pooled accumulator
            pltpu.VMEM((NUM_VIEWS * BATCH, FEAT_DIM), jnp.float32),         # persistent feats
        ],
        compiler_params=pltpu.CompilerParams(
            dimension_semantics=("arbitrary", "arbitrary")),
    )(*args)
    return out[0, 0]


# ============================ glue (patch extraction, forward) ============================

def extract_patches(x_img, y_img):
    """Both views -> (2, M_ROWS, K_REAL) bf16 im2col patches via one XLA grouped conv.
    bf16 cast happens BEFORE the patch conv and there is NO XLA-side K padding."""
    imgs = jnp.concatenate([x_img, y_img], axis=0).astype(jnp.bfloat16)     # (2N, C, H, W) bf16
    p = jax.lax.conv_general_dilated_patches(
        imgs, (KH, KW), (STRIDE, STRIDE), ((3, 3), (3, 3)),
        dimension_numbers=("NCHW", "OIHW", "NHWC"))                         # (2N, OH, OW, 147)
    return p.reshape(NUM_VIEWS, M_ROWS, K_REAL).astype(jnp.bfloat16)


@jax.jit
def vicreg_forward(params, x_img, y_img):
    patches = extract_patches(x_img, y_img)                                 # (2, M, 147) bf16
    return vicreg_fused(patches, params["conv_w"], params["head_w"], params["proj"])


# ============================ deterministic params ============================

def init_params(key):
    ks = jax.random.split(key, 8)

    def dense(k, shape, fan_in):
        return jax.random.normal(k, shape, jnp.float32) / jnp.sqrt(float(fan_in))

    conv_ws, head_ws = [], []
    for i in range(NUM_VIEWS):                         # backbone_1 / backbone_2: NOT shared
        cw = dense(ks[2 * i], (K_REAL, CONV_OUT), K_REAL)                   # (147, 64)
        cw = jnp.pad(cw, ((0, 0), (0, CONV_PAD - CONV_OUT)))                # zero cols -> exact
        hw = dense(ks[2 * i + 1], (CONV_OUT, FEAT_DIM), CONV_OUT)           # (64, 128)
        hw = jnp.pad(hw, ((0, CONV_PAD - CONV_OUT), (0, 0)))                # zero rows -> exact
        conv_ws.append(cw)
        head_ws.append(hw)

    params = {
        "conv_w": jnp.stack(conv_ws).astype(jnp.bfloat16),  # (2, 147, 128) bf16 (MXU)
        "head_w": jnp.stack(head_ws),                        # (2, 128, 128) f32
    }

    hidden = []
    kidx = 4
    for i in range(NUM_HIDDEN):
        w = dense(ks[kidx], (PROJ_SIZES[i], PROJ_SIZES[i + 1]), PROJ_SIZES[i])
        kidx += 1
        g = jnp.ones((1, PROJ_SIZES[i + 1]), jnp.float32)    # BN gamma
        b = jnp.zeros((1, PROJ_SIZES[i + 1]), jnp.float32)   # BN beta
        hidden.append((w, g, b))
    final_w = dense(ks[kidx], (PROJ_SIZES[-2], PROJ_SIZES[-1]), PROJ_SIZES[-2])
    # projector1 and projector2 share module instances in the PyTorch code -> one param set.
    params["proj"] = {"hidden": hidden, "final_w": final_w}
    return params


if __name__ == "__main__":
    key = jax.random.PRNGKey(0)
    kp, kx, ky = jax.random.split(key, 3)
    params = init_params(kp)
    x = jax.random.normal(kx, (BATCH, IN_CH, IMG, IMG), jnp.float32)
    y = jax.random.normal(ky, (BATCH, IN_CH, IMG, IMG), jnp.float32)
    loss = vicreg_forward(params, x, y)
    jax.block_until_ready(loss)
    print("KERNEL_OK")
</pallas_src>

<mosaic_0001>
module attributes {stable_mosaic.version = 11 : i64} {
  func.func @_vicreg_kernel(%arg0: i32, %arg1: i32, %arg2: memref<1x512x147xbf16, #tpu.memory_space<vmem>>, %arg3: memref<1x147x128xbf16, #tpu.memory_space<vmem>>, %arg4: memref<1x128x128xf32, #tpu.memory_space<vmem>>, %arg5: memref<128x128xf32, #tpu.memory_space<vmem>>, %arg6: memref<1x128xf32, #tpu.memory_space<vmem>>, %arg7: memref<1x128xf32, #tpu.memory_space<vmem>>, %arg8: memref<128x128xf32, #tpu.memory_space<vmem>>, %arg9: memref<1x128xf32, #tpu.memory_space<vmem>>, %arg10: memref<1x128xf32, #tpu.memory_space<vmem>>, %arg11: memref<128x128xf32, #tpu.memory_space<vmem>>, %arg12: memref<1x1xf32, #tpu.memory_space<smem>>, %arg13: memref<8x128xf32, #tpu.memory_space<vmem>>, %arg14: memref<16x128xf32, #tpu.memory_space<vmem>>) attributes {dimension_semantics = [#tpu.dimension_semantics<arbitrary>, #tpu.dimension_semantics<arbitrary>], iteration_bounds = array<i64: 2, 4>, scalar_prefetch = 0 : i64, scratch_operands = 2 : i64, tpu.core_type = #tpu.core_type<tc>, window_params = [{transform_indices = @transform_0, window_bounds = array<i64: 1, 512, 147>}, {transform_indices = @transform_1, window_bounds = array<i64: 1, 147, 128>}, {transform_indices = @transform_2, window_bounds = array<i64: 1, 128, 128>}, {pipeline_mode = #tpu.pipeline_mode<synchronous>, transform_indices = @transform_3, window_bounds = array<i64: 128, 128>}, {pipeline_mode = #tpu.pipeline_mode<synchronous>, transform_indices = @transform_4, window_bounds = array<i64: 1, 128>}, {pipeline_mode = #tpu.pipeline_mode<synchronous>, transform_indices = @transform_5, window_bounds = array<i64: 1, 128>}, {pipeline_mode = #tpu.pipeline_mode<synchronous>, transform_indices = @transform_6, window_bounds = array<i64: 128, 128>}, {pipeline_mode = #tpu.pipeline_mode<synchronous>, transform_indices = @transform_7, window_bounds = array<i64: 1, 128>}, {pipeline_mode = #tpu.pipeline_mode<synchronous>, transform_indices = @transform_8, window_bounds = array<i64: 1, 128>}, {pipeline_mode = #tpu.pipeline_mode<synchronous>, transform_indices = @transform_9, window_bounds = array<i64: 128, 128>}, {transform_indices = @transform_10, window_bounds = array<i64: 1, 1>}]} {
    %c0 = arith.constant 0 : index
    %c0_0 = arith.constant 0 : index
    %c0_1 = arith.constant 0 : index
    %0 = vector.load %arg2[%c0, %c0_0, %c0_1] : memref<1x512x147xbf16, #tpu.memory_space<vmem>>, vector<1x512x147xbf16>
    %1 = vector.shape_cast %0 : vector<1x512x147xbf16> to vector<512x147xbf16>
    %c0_2 = arith.constant 0 : index
    %c0_3 = arith.constant 0 : index
    %c0_4 = arith.constant 0 : index
    %2 = vector.load %arg3[%c0_2, %c0_3, %c0_4] : memref<1x147x128xbf16, #tpu.memory_space<vmem>>, vector<1x147x128xbf16>
    %3 = vector.shape_cast %2 : vector<1x147x128xbf16> to vector<147x128xbf16>
    %cst = arith.constant dense<0.000000e+00> : vector<512x128xf32>
    %4 = tpu.matmul %1, %3, %cst {dimension_numbers = #tpu.dot_dimension_numbers<[1], [0], [0], [1], [0, 0, 1, 1], [], []>} : vector<512x147xbf16>, vector<147x128xbf16>, vector<512x128xf32> -> vector<512x128xf32>
    %cst_5 = arith.constant 0.000000e+00 : f32
    %5 = vector.broadcast %cst_5 : f32 to vector<512x128xf32>
    %6 = arith.maximumf %4, %5 : vector<512x128xf32>
    %7 = vector.shape_cast %6 : vector<512x128xf32> to vector<2x256x128xf32>
    %cst_6 = arith.constant dense<0.000000e+00> : vector<2x128xf32>
    %8 = vector.multi_reduction <add>, %7, %cst_6 [1] : vector<2x256x128xf32> to vector<2x128xf32>
    %cst_7 = arith.constant 2.560000e+02 : f32
    %9 = vector.broadcast %cst_7 : f32 to vector<2x128xf32>
    %10 = arith.divf %8, %9 : vector<2x128xf32>
    %11 = tpu.iota {dimensions = array<i32: 0>} : vector<8x128xi32>
    %c2_i32 = arith.constant 2 : i32
    %12 = arith.muli %arg1, %c2_i32 : i32
    %cst_8 = arith.constant 0.000000e+00 : f32
    %13 = vector.broadcast %cst_8 : f32 to vector<8x128xf32>
    %c0_i32 = arith.constant 0 : i32
    %14 = arith.addi %12, %c0_i32 : i32
    %15 = vector.broadcast %14 : i32 to vector<8x128xi32>
    %16 = arith.cmpi eq, %11, %15 : vector<8x128xi32>
    %17 = vector.extract_strided_slice %10 {offsets = [0, 0], sizes = [1, 128], strides = [1, 1]} : vector<2x128xf32> to vector<1x128xf32>
    %cst_9 = arith.constant 0.000000e+00 : f32
    %18 = vector.shape_cast %17 : vector<1x128xf32> to vector<1x128xf32>
    %19 = vector.broadcast %18 : vector<1x128xf32> to vector<8x128xf32>
    %20 = vector.broadcast %cst_9 : f32 to vector<8x128xf32>
    %21 = arith.select %16, %19, %20 : vector<8x128xi1>, vector<8x128xf32>
    %22 = arith.addf %13, %21 : vector<8x128xf32>
    %c1_i32 = arith.constant 1 : i32
    %23 = arith.addi %12, %c1_i32 : i32
    %24 = vector.broadcast %23 : i32 to vector<8x128xi32>
    %25 = arith.cmpi eq, %11, %24 : vector<8x128xi32>
    %26 = vector.extract_strided_slice %10 {offsets = [1, 0], sizes = [1, 128], strides = [1, 1]} : vector<2x128xf32> to vector<1x128xf32>
    %cst_10 = arith.constant 0.000000e+00 : f32
    %27 = vector.shape_cast %26 : vector<1x128xf32> to vector<1x128xf32>
    %28 = vector.broadcast %27 : vector<1x128xf32> to vector<8x128xf32>
    %29 = vector.broadcast %cst_10 : f32 to vector<8x128xf32>
    %30 = arith.select %25, %28, %29 : vector<8x128xi1>, vector<8x128xf32>
    %31 = arith.addf %22, %30 : vector<8x128xf32>
    %c0_i32_11 = arith.constant 0 : i32
    %32 = arith.cmpi eq, %arg1, %c0_i32_11 : i32
    %33 = arith.extui %32 : i1 to i32
    %c0_i32_12 = arith.constant 0 : i32
    %34 = arith.cmpi ne, %33, %c0_i32_12 : i32
    scf.if %34 {
      %cst_22 = arith.constant 0.000000e+00 : f32
      %48 = vector.broadcast %cst_22 : f32 to vector<8x128xf32>
      %c0_23 = arith.constant 0 : index
      %c0_24 = arith.constant 0 : index
      %49 = vector.load %arg13[%c0_23, %c0_24] : memref<8x128xf32, #tpu.memory_space<vmem>>, vector<8x128xf32>
      tpu.vector_store %arg13[%c0_23, %c0_24], %48 {strides = array<i32>} : memref<8x128xf32, #tpu.memory_space<vmem>>, vector<8x128xf32>,
    } else {
    }
    %c0_13 = arith.constant 0 : index
    %c0_14 = arith.constant 0 : index
    %35 = vector.load %arg13[%c0_13, %c0_14] : memref<8x128xf32, #tpu.memory_space<vmem>>, vector<8x128xf32>
    %36 = arith.addf %35, %31 : vector<8x128xf32>
    %c0_15 = arith.constant 0 : index
    %c0_16 = arith.constant 0 : index
    %37 = vector.load %arg13[%c0_15, %c0_16] : memref<8x128xf32, #tpu.memory_space<vmem>>, vector<8x128xf32>
    tpu.vector_store %arg13[%c0_15, %c0_16], %36 {strides = array<i32>} : memref<8x128xf32, #tpu.memory_space<vmem>>, vector<8x128xf32>,
    %c3_i32 = arith.constant 3 : i32
    %38 = arith.cmpi eq, %arg1, %c3_i32 : i32
    %c0_i32_17 = arith.constant 0 : i32
    %39 = arith.cmpi eq, %arg0, %c0_i32_17 : i32
    %40 = arith.andi %38, %39 : i1
    %41 = arith.extui %40 : i1 to i32
    %c0_i32_18 = arith.constant 0 : i32
    %42 = arith.cmpi ne, %41, %c0_i32_18 : i32
    scf.if %42 {
      %c0_22 = arith.constant 0 : index
      %c0_23 = arith.constant 0 : index
      %48 = vector.load %arg13[%c0_22, %c0_23] : memref<8x128xf32, #tpu.memory_space<vmem>>, vector<8x128xf32>
      %c0_24 = arith.constant 0 : index
      %c0_25 = arith.constant 0 : index
      %c0_26 = arith.constant 0 : index
      %49 = vector.load %arg4[%c0_24, %c0_25, %c0_26] : memref<1x128x128xf32, #tpu.memory_space<vmem>>, vector<1x128x128xf32>
      %50 = vector.shape_cast %49 : vector<1x128x128xf32> to vector<128x128xf32>
      %cst_27 = arith.constant dense<0.000000e+00> : vector<8x128xf32>
      %51 = tpu.matmul %48, %50, %cst_27 {dimension_numbers = #tpu.dot_dimension_numbers<[1], [0], [0], [1], [0, 0, 1, 1], [], []>} : vector<8x128xf32>, vector<128x128xf32>, vector<8x128xf32> -> vector<8x128xf32>
      %c0_28 = arith.constant 0 : index
      %c0_29 = arith.constant 0 : index
      %52 = vector.load %arg14[%c0_28, %c0_29] : memref<16x128xf32, #tpu.memory_space<vmem>>, vector<8x128xf32>
      tpu.vector_store %arg14[%c0_28, %c0_29], %51 {strides = array<i32>} : memref<16x128xf32, #tpu.memory_space<vmem>>, vector<8x128xf32>,
    } else {
    }
    %c3_i32_19 = arith.constant 3 : i32
    %43 = arith.cmpi eq, %arg1, %c3_i32_19 : i32
    %c1_i32_20 = arith.constant 1 : i32
    %44 = arith.cmpi eq, %arg0, %c1_i32_20 : i32
    %45 = arith.andi %43, %44 : i1
    %46 = arith.extui %45 : i1 to i32
    %c0_i32_21 = arith.constant 0 : i32
    %47 = arith.cmpi ne, %46, %c0_i32_21 : i32
    scf.if %47 {
      %c0_22 = arith.constant 0 : index
      %c0_23 = arith.constant 0 : index
      %48 = vector.load %arg13[%c0_22, %c0_23] : memref<8x128xf32, #tpu.memory_space<vmem>>, vector<8x128xf32>
      %c0_24 = arith.constant 0 : index
      %c0_25 = arith.constant 0 : index
      %c0_26 = arith.constant 0 : index
      %49 = vector.load %arg4[%c0_24, %c0_25, %c0_26] : memref<1x128x128xf32, #tpu.memory_space<vmem>>, vector<1x128x128xf32>
      %50 = vector.shape_cast %49 : vector<1x128x128xf32> to vector<128x128xf32>
      %cst_27 = arith.constant dense<0.000000e+00> : vector<8x128xf32>
      %51 = tpu.matmul %48, %50, %cst_27 {dimension_numbers = #tpu.dot_dimension_numbers<[1], [0], [0], [1], [0, 0, 1, 1], [], []>} : vector<8x128xf32>, vector<128x128xf32>, vector<8x128xf32> -> vector<8x128xf32>
      %c8 = arith.constant 8 : index
      %c0_28 = arith.constant 0 : index
      %52 = vector.load %arg14[%c8, %c0_28] : memref<16x128xf32, #tpu.memory_space<vmem>>, vector<8x128xf32>
      tpu.vector_store %arg14[%c8, %c0_28], %51 {strides = array<i32>} : memref<16x128xf32, #tpu.memory_space<vmem>>, vector<8x128xf32>,
      %c0_29 = arith.constant 0 : index
      %c0_30 = arith.constant 0 : index
      %53 = vector.load %arg14[%c0_29, %c0_30] : memref<16x128xf32, #tpu.memory_space<vmem>>, vector<16x128xf32>
      %c0_31 = arith.constant 0 : index
      %c0_32 = arith.constant 0 : index
      %54 = vector.load %arg5[%c0_31, %c0_32] : memref<128x128xf32, #tpu.memory_space<vmem>>, vector<128x128xf32>
      %cst_33 = arith.constant dense<0.000000e+00> : vector<16x128xf32>
      %55 = tpu.matmul %53, %54, %cst_33 {dimension_numbers = #tpu.dot_dimension_numbers<[1], [0], [0], [1], [0, 0, 1, 1], [], []>} : vector<16x128xf32>, vector<128x128xf32>, vector<16x128xf32> -> vector<16x128xf32>
      %56 = vector.shape_cast %55 : vector<16x128xf32> to vector<2x8x128xf32>
      %cst_34 = arith.constant dense<0.000000e+00> : vector<2x128xf32>
      %57 = vector.multi_reduction <add>, %56, %cst_34 [1] : vector<2x8x128xf32> to vector<2x128xf32>
      %58 = vector.shape_cast %57 : vector<2x128xf32> to vector<2x1x128xf32>
      %cst_35 = arith.constant 8.000000e+00 : f32
      %59 = vector.broadcast %cst_35 : f32 to vector<2x1x128xf32>
      %60 = arith.divf %58, %59 : vector<2x1x128xf32>
      %61 = vector.broadcast %60 : vector<2x1x128xf32> to vector<2x8x128xf32>
      %62 = arith.subf %56, %61 : vector<2x8x128xf32>
      %63 = arith.mulf %62, %62 : vector<2x8x128xf32>
      %cst_36 = arith.constant dense<0.000000e+00> : vector<2x128xf32>
      %64 = vector.multi_reduction <add>, %63, %cst_36 [1] : vector<2x8x128xf32> to vector<2x128xf32>
      %65 = vector.shape_cast %64 : vector<2x128xf32> to vector<2x1x128xf32>
      %cst_37 = arith.constant 8.000000e+00 : f32
      %66 = vector.broadcast %cst_37 : f32 to vector<2x1x128xf32>
      %67 = arith.divf %65, %66 : vector<2x1x128xf32>
      %68 = vector.broadcast %60 : vector<2x1x128xf32> to vector<2x8x128xf32>
      %69 = arith.subf %56, %68 : vector<2x8x128xf32>
      %cst_38 = arith.constant 9.99999974E-6 : f32
      %70 = vector.broadcast %cst_38 : f32 to vector<2x1x128xf32>
      %71 = arith.addf %67, %70 : vector<2x1x128xf32>
      %72 = math.rsqrt %71 : vector<2x1x128xf32>
      %73 = vector.broadcast %72 : vector<2x1x128xf32> to vector<2x8x128xf32>
      %74 = arith.mulf %69, %73 : vector<2x8x128xf32>
      %c0_39 = arith.constant 0 : index
      %c0_40 = arith.constant 0 : index
      %75 = vector.load %arg6[%c0_39, %c0_40] : memref<1x128xf32, #tpu.memory_space<vmem>>, vector<1x128xf32>
      %76 = vector.shape_cast %75 : vector<1x128xf32> to vector<1x1x128xf32>
      %77 = vector.broadcast %76 : vector<1x1x128xf32> to vector<2x8x128xf32>
      %78 = arith.mulf %74, %77 : vector<2x8x128xf32>
      %c0_41 = arith.constant 0 : index
      %c0_42 = arith.constant 0 : index
      %79 = vector.load %arg7[%c0_41, %c0_42] : memref<1x128xf32, #tpu.memory_space<vmem>>, vector<1x128xf32>
      %80 = vector.shape_cast %79 : vector<1x128xf32> to vector<1x1x128xf32>
      %81 = vector.broadcast %80 : vector<1x1x128xf32> to vector<2x8x128xf32>
      %82 = arith.addf %78, %81 : vector<2x8x128xf32>
      %cst_43 = arith.constant 0.000000e+00 : f32
      %83 = vector.broadcast %cst_43 : f32 to vector<2x8x128xf32>
      %84 = arith.maximumf %82, %83 : vector<2x8x128xf32>
      %85 = vector.shape_cast %84 : vector<2x8x128xf32> to vector<16x128xf32>
      %c0_44 = arith.constant 0 : index
      %c0_45 = arith.constant 0 : index
      %86 = vector.load %arg8[%c0_44, %c0_45] : memref<128x128xf32, #tpu.memory_space<vmem>>, vector<128x128xf32>
      %cst_46 = arith.constant dense<0.000000e+00> : vector<16x128xf32>
      %87 = tpu.matmul %85, %86, %cst_46 {dimension_numbers = #tpu.dot_dimension_numbers<[1], [0], [0], [1], [0, 0, 1, 1], [], []>} : vector<16x128xf32>, vector<128x128xf32>, vector<16x128xf32> -> vector<16x128xf32>
      %88 = vector.shape_cast %87 : vector<16x128xf32> to vector<2x8x128xf32>
      %cst_47 = arith.constant dense<0.000000e+00> : vector<2x128xf32>
      %89 = vector.multi_reduction <add>, %88, %cst_47 [1] : vector<2x8x128xf32> to vector<2x128xf32>
      %90 = vector.shape_cast %89 : vector<2x128xf32> to vector<2x1x128xf32>
      %cst_48 = arith.constant 8.000000e+00 : f32
      %91 = vector.broadcast %cst_48 : f32 to vector<2x1x128xf32>
      %92 = arith.divf %90, %91 : vector<2x1x128xf32>
      %93 = vector.broadcast %92 : vector<2x1x128xf32> to vector<2x8x128xf32>
      %94 = arith.subf %88, %93 : vector<2x8x128xf32>
      %95 = arith.mulf %94, %94 : vector<2x8x128xf32>
      %cst_49 = arith.constant dense<0.000000e+00> : vector<2x128xf32>
      %96 = vector.multi_reduction <add>, %95, %cst_49 [1] : vector<2x8x128xf32> to vector<2x128xf32>
      %97 = vector.shape_cast %96 : vector<2x128xf32> to vector<2x1x128xf32>
      %cst_50 = arith.constant 8.000000e+00 : f32
      %98 = vector.broadcast %cst_50 : f32 to vector<2x1x128xf32>
      %99 = arith.divf %97, %98 : vector<2x1x128xf32>
      %100 = vector.broadcast %92 : vector<2x1x128xf32> to vector<2x8x128xf32>
      %101 = arith.subf %88, %100 : vector<2x8x128xf32>
      %cst_51 = arith.constant 9.99999974E-6 : f32
      %102 = vector.broadcast %cst_51 : f32 to vector<2x1x128xf32>
      %103 = arith.addf %99, %102 : vector<2x1x128xf32>
      %104 = math.rsqrt %103 : vector<2x1x128xf32>
      %105 = vector.broadcast %104 : vector<2x1x128xf32> to vector<2x8x128xf32>
      %106 = arith.mulf %101, %105 : vector<2x8x128xf32>
      %c0_52 = arith.constant 0 : index
      %c0_53 = arith.constant 0 : index
      %107 = vector.load %arg9[%c0_52, %c0_53] : memref<1x128xf32, #tpu.memory_space<vmem>>, vector<1x128xf32>
      %108 = vector.shape_cast %107 : vector<1x128xf32> to vector<1x1x128xf32>
      %109 = vector.broadcast %108 : vector<1x1x128xf32> to vector<2x8x128xf32>
      %110 = arith.mulf %106, %109 : vector<2x8x128xf32>
      %c0_54 = arith.constant 0 : index
      %c0_55 = arith.constant 0 : index
      %111 = vector.load %arg10[%c0_54, %c0_55] : memref<1x128xf32, #tpu.memory_space<vmem>>, vector<1x128xf32>
      %112 = vector.shape_cast %111 : vector<1x128xf32> to vector<1x1x128xf32>
      %113 = vector.broadcast %112 : vector<1x1x128xf32> to vector<2x8x128xf32>
      %114 = arith.addf %110, %113 : vector<2x8x128xf32>
      %cst_56 = arith.constant 0.000000e+00 : f32
      %115 = vector.broadcast %cst_56 : f32 to vector<2x8x128xf32>
      %116 = arith.maximumf %114, %115 : vector<2x8x128xf32>
      %117 = vector.shape_cast %116 : vector<2x8x128xf32> to vector<16x128xf32>
      %c0_57 = arith.constant 0 : index
      %c0_58 = arith.constant 0 : index
      %118 = vector.load %arg11[%c0_57, %c0_58] : memref<128x128xf32, #tpu.memory_space<vmem>>, vector<128x128xf32>
      %cst_59 = arith.constant dense<0.000000e+00> : vector<16x128xf32>
      %119 = tpu.matmul %117, %118, %cst_59 {dimension_numbers = #tpu.dot_dimension_numbers<[1], [0], [0], [1], [0, 0, 1, 1], [], []>} : vector<16x128xf32>, vector<128x128xf32>, vector<16x128xf32> -> vector<16x128xf32>
      %120 = vector.extract_strided_slice %119 {offsets = [0, 0], sizes = [8, 128], strides = [1, 1]} : vector<16x128xf32> to vector<8x128xf32>
      %121 = vector.extract_strided_slice %119 {offsets = [8, 0], sizes = [8, 128], strides = [1, 1]} : vector<16x128xf32> to vector<8x128xf32>
      %122 = arith.subf %120, %121 : vector<8x128xf32>
      %123 = arith.mulf %122, %122 : vector<8x128xf32>
      %124 = vector.shape_cast %123 : vector<8x128xf32> to vector<1x8x128xf32>
      %cst_60 = arith.constant dense<0.000000e+00> : vector<1xf32>
      %125 = vector.multi_reduction <add>, %124, %cst_60 [1, 2] : vector<1x8x128xf32> to vector<1xf32>
      %126 = vector.shape_cast %125 : vector<1xf32> to vector<1x1x1xf32>
      %127 = vector.extract %126[0, 0, 0] : f32 from vector<1x1x1xf32>
      %cst_61 = arith.constant 1.024000e+03 : f32
      %128 = arith.divf %127, %cst_61 : f32
      %cst_62 = arith.constant dense<0.000000e+00> : vector<128xf32>
      %129 = vector.multi_reduction <add>, %120, %cst_62 [0] : vector<8x128xf32> to vector<128xf32>
      %130 = vector.shape_cast %129 : vector<128xf32> to vector<1x128xf32>
      %cst_63 = arith.constant 8.000000e+00 : f32
      %131 = vector.broadcast %cst_63 : f32 to vector<1x128xf32>
      %132 = arith.divf %130, %131 : vector<1x128xf32>
      %133 = vector.broadcast %132 : vector<1x128xf32> to vector<8x128xf32>
      %134 = arith.subf %120, %133 : vector<8x128xf32>
      %cst_64 = arith.constant dense<0.000000e+00> : vector<128xf32>
      %135 = vector.multi_reduction <add>, %121, %cst_64 [0] : vector<8x128xf32> to vector<128xf32>
      %136 = vector.shape_cast %135 : vector<128xf32> to vector<1x128xf32>
      %cst_65 = arith.constant 8.000000e+00 : f32
      %137 = vector.broadcast %cst_65 : f32 to vector<1x128xf32>
      %138 = arith.divf %136, %137 : vector<1x128xf32>
      %139 = vector.broadcast %138 : vector<1x128xf32> to vector<8x128xf32>
      %140 = arith.subf %121, %139 : vector<8x128xf32>
      %141 = arith.mulf %134, %134 : vector<8x128xf32>
      %cst_66 = arith.constant dense<0.000000e+00> : vector<128xf32>
      %142 = vector.multi_reduction <add>, %141, %cst_66 [0] : vector<8x128xf32> to vector<128xf32>
      %143 = vector.shape_cast %142 : vector<128xf32> to vector<1x128xf32>
      %cst_67 = arith.constant 0.142857149 : f32
      %144 = vector.broadcast %cst_67 : f32 to vector<1x128xf32>
      %145 = arith.mulf %143, %144 : vector<1x128xf32>
      %146 = arith.mulf %140, %140 : vector<8x128xf32>
      %cst_68 = arith.constant dense<0.000000e+00> : vector<128xf32>
      %147 = vector.multi_reduction <add>, %146, %cst_68 [0] : vector<8x128xf32> to vector<128xf32>
      %148 = vector.shape_cast %147 : vector<128xf32> to vector<1x128xf32>
      %cst_69 = arith.constant 0.142857149 : f32
      %149 = vector.broadcast %cst_69 : f32 to vector<1x128xf32>
      %150 = arith.mulf %148, %149 : vector<1x128xf32>
      %cst_70 = arith.constant 9.99999974E-5 : f32
      %151 = vector.broadcast %cst_70 : f32 to vector<1x128xf32>
      %152 = arith.addf %145, %151 : vector<1x128xf32>
      %153 = math.sqrt %152 : vector<1x128xf32>
      %cst_71 = arith.constant 9.99999974E-5 : f32
      %154 = vector.broadcast %cst_71 : f32 to vector<1x128xf32>
      %155 = arith.addf %150, %154 : vector<1x128xf32>
      %156 = math.sqrt %155 : vector<1x128xf32>
      %cst_72 = arith.constant 1.000000e+00 : f32
      %157 = vector.broadcast %cst_72 : f32 to vector<1x128xf32>
      %158 = arith.subf %157, %153 : vector<1x128xf32>
      %cst_73 = arith.constant 0.000000e+00 : f32
      %159 = vector.broadcast %cst_73 : f32 to vector<1x128xf32>
      %160 = arith.maximumf %158, %159 : vector<1x128xf32>
      %161 = vector.shape_cast %160 : vector<1x128xf32> to vector<1x1x128xf32>
      %cst_74 = arith.constant dense<0.000000e+00> : vector<1xf32>
      %162 = vector.multi_reduction <add>, %161, %cst_74 [1, 2] : vector<1x1x128xf32> to vector<1xf32>
      %163 = vector.shape_cast %162 : vector<1xf32> to vector<1x1x1xf32>
      %164 = vector.extract %163[0, 0, 0] : f32 from vector<1x1x1xf32>
      %cst_75 = arith.constant 1.280000e+02 : f32
      %165 = arith.divf %164, %cst_75 : f32
      %cst_76 = arith.constant 5.000000e-01 : f32
      %166 = arith.mulf %165, %cst_76 : f32
      %cst_77 = arith.constant 1.000000e+00 : f32
      %167 = vector.broadcast %cst_77 : f32 to vector<1x128xf32>
      %168 = arith.subf %167, %156 : vector<1x128xf32>
      %cst_78 = arith.constant 0.000000e+00 : f32
      %169 = vector.broadcast %cst_78 : f32 to vector<1x128xf32>
      %170 = arith.maximumf %168, %169 : vector<1x128xf32>
      %171 = vector.shape_cast %170 : vector<1x128xf32> to vector<1x1x128xf32>
      %cst_79 = arith.constant dense<0.000000e+00> : vector<1xf32>
      %172 = vector.multi_reduction <add>, %171, %cst_79 [1, 2] : vector<1x1x128xf32> to vector<1xf32>
      %173 = vector.shape_cast %172 : vector<1xf32> to vector<1x1x1xf32>
      %174 = vector.extract %173[0, 0, 0] : f32 from vector<1x1x1xf32>
      %cst_80 = arith.constant 1.280000e+02 : f32
      %175 = arith.divf %174, %cst_80 : f32
      %cst_81 = arith.constant 5.000000e-01 : f32
      %176 = arith.mulf %175, %cst_81 : f32
      %177 = arith.addf %166, %176 : f32
      %cst_82 = arith.constant dense<0.000000e+00> : vector<128x128xf32>
      %178 = tpu.matmul %134, %134, %cst_82 {dimension_numbers = #tpu.dot_dimension_numbers<[0], [0], [1], [1], [0, 1, 1, 1], [], []>} : vector<8x128xf32>, vector<8x128xf32>, vector<128x128xf32> -> vector<128x128xf32>
      %cst_83 = arith.constant 0.142857149 : f32
      %179 = vector.broadcast %cst_83 : f32 to vector<128x128xf32>
      %180 = arith.mulf %178, %179 : vector<128x128xf32>
      %cst_84 = arith.constant dense<0.000000e+00> : vector<128x128xf32>
      %181 = tpu.matmul %140, %140, %cst_84 {dimension_numbers = #tpu.dot_dimension_numbers<[0], [0], [1], [1], [0, 1, 1, 1], [], []>} : vector<8x128xf32>, vector<8x128xf32>, vector<128x128xf32> -> vector<128x128xf32>
      %cst_85 = arith.constant 0.142857149 : f32
      %182 = vector.broadcast %cst_85 : f32 to vector<128x128xf32>
      %183 = arith.mulf %181, %182 : vector<128x128xf32>
      %184 = tpu.iota {dimensions = array<i32: 0>} : vector<128x128xi32>
      %185 = tpu.iota {dimensions = array<i32: 1>} : vector<128x128xi32>
      %186 = arith.cmpi ne, %184, %185 : vector<128x128xi32>
      %187 = arith.extui %186 : vector<128x128xi1> to vector<128x128xi32>
      %188 = arith.sitofp %187 : vector<128x128xi32> to vector<128x128xf32>
      %189 = arith.mulf %180, %188 : vector<128x128xf32>
      %190 = arith.mulf %189, %189 : vector<128x128xf32>
      %191 = vector.shape_cast %190 : vector<128x128xf32> to vector<1x128x128xf32>
      %cst_86 = arith.constant dense<0.000000e+00> : vector<1xf32>
      %192 = vector.multi_reduction <add>, %191, %cst_86 [1, 2] : vector<1x128x128xf32> to vector<1xf32>
      %193 = vector.shape_cast %192 : vector<1xf32> to vector<1x1x1xf32>
      %194 = vector.extract %193[0, 0, 0] : f32 from vector<1x1x1xf32>
      %195 = arith.mulf %183, %188 : vector<128x128xf32>
      %196 = arith.mulf %195, %195 : vector<128x128xf32>
      %197 = vector.shape_cast %196 : vector<128x128xf32> to vector<1x128x128xf32>
      %cst_87 = arith.constant dense<0.000000e+00> : vector<1xf32>
      %198 = vector.multi_reduction <add>, %197, %cst_87 [1, 2] : vector<1x128x128xf32> to vector<1xf32>
      %199 = vector.shape_cast %198 : vector<1xf32> to vector<1x1x1xf32>
      %200 = vector.extract %199[0, 0, 0] : f32 from vector<1x1x1xf32>
      %201 = arith.addf %194, %200 : f32
      %cst_88 = arith.constant 1.280000e+02 : f32
      %202 = arith.divf %201, %cst_88 : f32
      %cst_89 = arith.constant 2.500000e+01 : f32
      %203 = arith.mulf %cst_89, %128 : f32
      %cst_90 = arith.constant 2.500000e+01 : f32
      %204 = arith.mulf %cst_90, %177 : f32
      %205 = arith.addf %203, %204 : f32
      %cst_91 = arith.constant 1.000000e+00 : f32
      %206 = arith.mulf %cst_91, %202 : f32
      %207 = arith.addf %205, %206 : f32
      %c0_92 = arith.constant 0 : index
      %c0_93 = arith.constant 0 : index
      %208 = memref.load %arg12[%c0_92, %c0_93] : memref<1x1xf32, #tpu.memory_space<smem>>
      memref.store %207, %arg12[%c0_92, %c0_93] : memref<1x1xf32, #tpu.memory_space<smem>>
    } else {
    }
    return
  }
  func.func @transform_0(%arg0: i32, %arg1: i32) -> (i32, i32, i32) {
    %c0_i32 = arith.constant 0 : i32
    %c0_i32_0 = arith.constant 0 : i32
    return %arg0, %arg1, %c0_i32 : i32, i32, i32
  }
  func.func @transform_1(%arg0: i32, %arg1: i32) -> (i32, i32, i32) {
    %c0_i32 = arith.constant 0 : i32
    %c0_i32_0 = arith.constant 0 : i32
    %c0_i32_1 = arith.constant 0 : i32
    return %arg0, %c0_i32, %c0_i32_0 : i32, i32, i32
  }
  func.func @transform_2(%arg0: i32, %arg1: i32) -> (i32, i32, i32) {
    %c0_i32 = arith.constant 0 : i32
    %c0_i32_0 = arith.constant 0 : i32
    %c0_i32_1 = arith.constant 0 : i32
    return %arg0, %c0_i32, %c0_i32_0 : i32, i32, i32
  }
  func.func @transform_3(%arg0: i32, %arg1: i32) -> (i32, i32) {
    %c0_i32 = arith.constant 0 : i32
    %c0_i32_0 = arith.constant 0 : i32
    %c0_i32_1 = arith.constant 0 : i32
    return %c0_i32, %c0_i32_0 : i32, i32
  }
  func.func @transform_4(%arg0: i32, %arg1: i32) -> (i32, i32) {
    %c0_i32 = arith.constant 0 : i32
    %c0_i32_0 = arith.constant 0 : i32
    %c0_i32_1 = arith.constant 0 : i32
    return %c0_i32, %c0_i32_0 : i32, i32
  }
  func.func @transform_5(%arg0: i32, %arg1: i32) -> (i32, i32) {
    %c0_i32 = arith.constant 0 : i32
    %c0_i32_0 = arith.constant 0 : i32
    %c0_i32_1 = arith.constant 0 : i32
    return %c0_i32, %c0_i32_0 : i32, i32
  }
  func.func @transform_6(%arg0: i32, %arg1: i32) -> (i32, i32) {
    %c0_i32 = arith.constant 0 : i32
    %c0_i32_0 = arith.constant 0 : i32
    %c0_i32_1 = arith.constant 0 : i32
    return %c0_i32, %c0_i32_0 : i32, i32
  }
  func.func @transform_7(%arg0: i32, %arg1: i32) -> (i32, i32) {
    %c0_i32 = arith.constant 0 : i32
    %c0_i32_0 = arith.constant 0 : i32
    %c0_i32_1 = arith.constant 0 : i32
    return %c0_i32, %c0_i32_0 : i32, i32
  }
  func.func @transform_8(%arg0: i32, %arg1: i32) -> (i32, i32) {
    %c0_i32 = arith.constant 0 : i32
    %c0_i32_0 = arith.constant 0 : i32
    %c0_i32_1 = arith.constant 0 : i32
    return %c0_i32, %c0_i32_0 : i32, i32
  }
  func.func @transform_9(%arg0: i32, %arg1: i32) -> (i32, i32) {
    %c0_i32 = arith.constant 0 : i32
    %c0_i32_0 = arith.constant 0 : i32
    %c0_i32_1 = arith.constant 0 : i32
    return %c0_i32, %c0_i32_0 : i32, i32
  }
  func.func @transform_10(%arg0: i32, %arg1: i32) -> (i32, i32) {
    %c0_i32 = arith.constant 0 : i32
    %c0_i32_0 = arith.constant 0 : i32
    %c0_i32_1 = arith.constant 0 : i32
    return %c0_i32, %c0_i32_0 : i32, i32
  }
}

</mosaic_0001>

<llo_original>
// kernel: vicreg_forward.1
$region0: #{vicreg_forward.1}
  #allocation0 [shape = 'u32[]', space=smem, size = 0x4, offset = 0x4, fixed_abs, tag = 'smem constant byte address 0x4 - core index']
  #allocation1 [shape = 'u32[144,128]{1,0:T(1,128)}', space=vmem, size = 0x12000, scoped, tag = 'internal scratch']
  #allocation2 [shape = 'f32[8,128]{1,0:T(8,128)}', space=vmem, size = 0x1000, scoped, tag = 'scratch operand']
  #allocation3 [shape = 'f32[16,128]{1,0:T(8,128)}', space=vmem, size = 0x2000, scoped, tag = 'scratch operand']
  %s0 = inlined_call_operand.vmem [shape: bf16[2,2048,147], index: 0, kind: input, shape index: {}]
  %s1 = inlined_call_operand.vmem [shape: bf16[2,147,128], index: 1, kind: input, shape index: {}]
  %s2 = inlined_call_operand.vmem [shape: f32[2,128,128], index: 2, kind: input, shape index: {}]
  %s3 = inlined_call_operand.vmem [shape: f32[128,128], index: 3, kind: input, shape index: {}]
  %s4 = inlined_call_operand.vmem [shape: f32[1,128], index: 4, kind: input, shape index: {}]
  %s5 = inlined_call_operand.vmem [shape: f32[1,128], index: 5, kind: input, shape index: {}]
  %s6 = inlined_call_operand.vmem [shape: f32[128,128], index: 6, kind: input, shape index: {}]
  %s7 = inlined_call_operand.vmem [shape: f32[1,128], index: 7, kind: input, shape index: {}]
  %s8 = inlined_call_operand.vmem [shape: f32[1,128], index: 8, kind: input, shape index: {}]
  %s9 = inlined_call_operand.vmem [shape: f32[128,128], index: 9, kind: input, shape index: {}]
  %s10 = inlined_call_operand.hbm [shape: f32[1,1], index: 10, kind: output, shape index: {}]
  %s11 = sld [smem:[#allocation0]]
  $region85: #{vicreg_forward.1} parent=0
    _
  %s13 = ssub.s32 1, %s11
  %s14 = scalar_select 0, %s13, %s11
  $region1: #{vicreg_forward.1} parent=0
    #allocation4 [shape = 'u8[512]{0}', space=smem, size = 0x200, scoped, tag = 'output window, operand 0, single buffered']
    #allocation5 [shape = 's32[2]{0}', space=sflag, size = 0x8, scoped, tag = 'scoped memory for vicreg_forward.1']
    %15 = vsyncpa [#allocation5], 0
    loop: start=0, step=1, limit=10
    $region2: #{vicreg_forward.1} parent=1 // loop_pre_header
      _
    $region3: #{vicreg_forward.1} parent=1 // loop_header
      %s17 = sphi 0, %s21
      %p18 = scmp.ge.s32.totalorder %s17, 10
      %s24 = sphi 0, %s36
      %s25 = sphi 0, %s32
      %s26 = sphi 0, %s24
      %s27 = sphi 0, %s25
      %s28 = sphi 0, %s26
      %s29 = sphi 0, %s27
      %s41 = sphi 0, %s43
      %s44 = sphi 0, %s41
      %s45 = sphi 0, %s44
      %s61 = sphi 0, %s45
      %s67 = sphi 0, %s69
      %s70 = sphi 0, %s67
      %s71 = sphi 0, %s70
      %s87 = sphi 0, %s71
      %s93 = sphi 0, %s95
      %s96 = sphi 0, %s93
      %s97 = sphi 0, %s96
      %s113 = sphi 0, %s97
      %s117 = sphi 0, %s117
      %s119 = sphi 0, %s117
      %s120 = sphi 0, %s119
      %s134 = sphi 0, %s120
      %s138 = sphi 0, %s138
      %s140 = sphi 0, %s138
      %s141 = sphi 0, %s140
      %s155 = sphi 0, %s141
      %s159 = sphi 0, %s159
      %s161 = sphi 0, %s159
      %s162 = sphi 0, %s161
      %s176 = sphi 0, %s162
      %s180 = sphi 0, %s180
      %s182 = sphi 0, %s180
      %s183 = sphi 0, %s182
      %s197 = sphi 0, %s183
      %s201 = sphi 0, %s201
      %s203 = sphi 0, %s201
      %s204 = sphi 0, %s203
      %s218 = sphi 0, %s204
      %s222 = sphi 0, %s222
      %s224 = sphi 0, %s222
      %s225 = sphi 0, %s224
      %s239 = sphi 0, %s225
      %s243 = sphi 0, %s243
      %s245 = sphi 0, %s243
      %s246 = sphi 0, %s245
      %s260 = sphi 0, %s246
      %s264 = sphi 0, %s264
      %s266 = sphi 0, %s264
      %s267 = sphi 0, %s266
      %s281 = sphi 0, %s267
    $region4: #{vicreg_forward.1} parent=1 // loop_header_branch
      %20 = sbr.rel (%p18) target = $region8
    $region5: #{vicreg_forward.1} parent=1 // loop_body
      %s22 = ssub.s32 %s17, 1
      %s23 = ssub.s32 %s17, 2
      %s30 = sadd.s32 1, %s25
      %p31 = scmp.ge.s32.totalorder %s30, 4
      %s32 = scalar_select %p31, 0, %s30
      %s33 = sadd.s32 1, %s24
      %s34 = scalar_select %p31, %s33, %s24
      %p35 = scmp.ge.s32.totalorder %s34, 2
      %s36 = scalar_select %p35, 0, %s34
      %s37 = ssub.s32 %s24, %s36
      %s38 = ssub.s32 %s25, %s32
      %s39 = sor.u32 %s37, %s38
      %p40 = scmp.eq.s32.totalorder %s39, 0
      %s42 = sadd.s32 %s41, 1
      %s43 = scalar_select %p40, %s41, %s42
      %p46 = pneg %p40
      %p47 = scmp.eq.s32.totalorder %s17, 7
      %p48 = por %p46, %p47
      %p49 = scmp.ne.s32.totalorder %s41, %s44
      %p50 = scmp.eq.s32.totalorder %s17, 0
      %p51 = por %p49, %p50
      %p52 = scmp.ne.s32.totalorder %s41, %s44
      %p53 = scmp.eq.s32.totalorder %s22, 7
      %p54 = por %p52, %p53
      %p55 = scmp.ne.s32.totalorder %s44, %s45
      %p56 = scmp.eq.s32.totalorder %s22, 0
      %p57 = por %p55, %p56
      %p58 = scmp.ne.s32.totalorder %s44, %s45
      %p59 = scmp.eq.s32.totalorder %s23, 7
      %p60 = por %p58, %p59
      %p62 = scmp.ne.s32.totalorder %s45, %s61
      %p63 = scmp.eq.s32.totalorder %s23, 0
      %p64 = por %p62, %p63
      %s65 = ssub.s32 %s24, %s36
      %p66 = scmp.eq.s32.totalorder %s65, 0
      %s68 = sadd.s32 %s67, 1
      %s69 = scalar_select %p66, %s67, %s68
      %p72 = pneg %p66
      %p73 = scmp.eq.s32.totalorder %s17, 7
      %p74 = por %p72, %p73
      %p75 = scmp.ne.s32.totalorder %s67, %s70
      %p76 = scmp.eq.s32.totalorder %s17, 0
      %p77 = por %p75, %p76
      %p78 = scmp.ne.s32.totalorder %s67, %s70
      %p79 = scmp.eq.s32.totalorder %s22, 7
      %p80 = por %p78, %p79
      %p81 = scmp.ne.s32.totalorder %s70, %s71
      %p82 = scmp.eq.s32.totalorder %s22, 0
      %p83 = por %p81, %p82
      %p84 = scmp.ne.s32.totalorder %s70, %s71
      %p85 = scmp.eq.s32.totalorder %s23, 7
      %p86 = por %p84, %p85
      %p88 = scmp.ne.s32.totalorder %s71, %s87
      %p89 = scmp.eq.s32.totalorder %s23, 0
      %p90 = por %p88, %p89
      %s91 = ssub.s32 %s24, %s36
      %p92 = scmp.eq.s32.totalorder %s91, 0
      %s94 = sadd.s32 %s93, 1
      %s95 = scalar_select %p92, %s93, %s94
      %p98 = pneg %p92
      %p99 = scmp.eq.s32.totalorder %s17, 7
      %p100 = por %p98, %p99
      %p101 = scmp.ne.s32.totalorder %s93, %s96
      %p102 = scmp.eq.s32.totalorder %s17, 0
      %p103 = por %p101, %p102
      %p104 = scmp.ne.s32.totalorder %s93, %s96
      %p105 = scmp.eq.s32.totalorder %s22, 7
      %p106 = por %p104, %p105
      %p107 = scmp.ne.s32.totalorder %s96, %s97
      %p108 = scmp.eq.s32.totalorder %s22, 0
      %p109 = por %p107, %p108
      %p110 = scmp.ne.s32.totalorder %s96, %s97
      %p111 = scmp.eq.s32.totalorder %s23, 7
      %p112 = por %p110, %p111
      %p114 = scmp.ne.s32.totalorder %s97, %s113
      %p115 = scmp.eq.s32.totalorder %s23, 0
      %p116 = por %p114, %p115
      %s118 = sadd.s32 %s117, 1
      %p121 = scmp.eq.s32.totalorder %s17, 7
      %p122 = scmp.ne.s32.totalorder %s117, %s119
      %p123 = scmp.eq.s32.totalorder %s17, 0
      %p124 = por %p122, %p123
      %p125 = scmp.ne.s32.totalorder %s117, %s119
      %p126 = scmp.eq.s32.totalorder %s22, 7
      %p127 = por %p125, %p126
      %p128 = scmp.ne.s32.totalorder %s119, %s120
      %p129 = scmp.eq.s32.totalorder %s22, 0
      %p130 = por %p128, %p129
      %p131 = scmp.ne.s32.totalorder %s119, %s120
      %p132 = scmp.eq.s32.totalorder %s23, 7
      %p133 = por %p131, %p132
      %p135 = scmp.ne.s32.totalorder %s120, %s134
      %p136 = scmp.eq.s32.totalorder %s23, 0
      %p137 = por %p135, %p136
      %s139 = sadd.s32 %s138, 1
      %p142 = scmp.eq.s32.totalorder %s17, 7
      %p143 = scmp.ne.s32.totalorder %s138, %s140
      %p144 = scmp.eq.s32.totalorder %s17, 0
      %p145 = por %p143, %p144
      %p146 = scmp.ne.s32.totalorder %s138, %s140
      %p147 = scmp.eq.s32.totalorder %s22, 7
      %p148 = por %p146, %p147
      %p149 = scmp.ne.s32.totalorder %s140, %s141
      %p150 = scmp.eq.s32.totalorder %s22, 0
      %p151 = por %p149, %p150
      %p152 = scmp.ne.s32.totalorder %s140, %s141
      %p153 = scmp.eq.s32.totalorder %s23, 7
      %p154 = por %p152, %p153
      %p156 = scmp.ne.s32.totalorder %s141, %s155
      %p157 = scmp.eq.s32.totalorder %s23, 0
      %p158 = por %p156, %p157
      %s160 = sadd.s32 %s159, 1
      %p163 = scmp.eq.s32.totalorder %s17, 7
      %p164 = scmp.ne.s32.totalorder %s159, %s161
      %p165 = scmp.eq.s32.totalorder %s17, 0
      %p166 = por %p164, %p165
      %p167 = scmp.ne.s32.totalorder %s159, %s161
      %p168 = scmp.eq.s32.totalorder %s22, 7
      %p169 = por %p167, %p168
      %p170 = scmp.ne.s32.totalorder %s161, %s162
      %p171 = scmp.eq.s32.totalorder %s22, 0
      %p172 = por %p170, %p171
      %p173 = scmp.ne.s32.totalorder %s161, %s162
      %p174 = scmp.eq.s32.totalorder %s23, 7
      %p175 = por %p173, %p174
      %p177 = scmp.ne.s32.totalorder %s162, %s176
      %p178 = scmp.eq.s32.totalorder %s23, 0
      %p179 = por %p177, %p178
      %s181 = sadd.s32 %s180, 1
      %p184 = scmp.eq.s32.totalorder %s17, 7
      %p185 = scmp.ne.s32.totalorder %s180, %s182
      %p186 = scmp.eq.s32.totalorder %s17, 0
      %p187 = por %p185, %p186
      %p188 = scmp.ne.s32.totalorder %s180, %s182
      %p189 = scmp.eq.s32.totalorder %s22, 7
      %p190 = por %p188, %p189
      %p191 = scmp.ne.s32.totalorder %s182, %s183
      %p192 = scmp.eq.s32.totalorder %s22, 0
      %p193 = por %p191, %p192
      %p194 = scmp.ne.s32.totalorder %s182, %s183
      %p195 = scmp.eq.s32.totalorder %s23, 7
      %p196 = por %p194, %p195
      %p198 = scmp.ne.s32.totalorder %s183, %s197
      %p199 = scmp.eq.s32.totalorder %s23, 0
      %p200 = por %p198, %p199
      %s202 = sadd.s32 %s201, 1
      %p205 = scmp.eq.s32.totalorder %s17, 7
      %p206 = scmp.ne.s32.totalorder %s201, %s203
      %p207 = scmp.eq.s32.totalorder %s17, 0
      %p208 = por %p206, %p207
      %p209 = scmp.ne.s32.totalorder %s201, %s203
      %p210 = scmp.eq.s32.totalorder %s22, 7
      %p211 = por %p209, %p210
      %p212 = scmp.ne.s32.totalorder %s203, %s204
      %p213 = scmp.eq.s32.totalorder %s22, 0
      %p214 = por %p212, %p213
      %p215 = scmp.ne.s32.totalorder %s203, %s204
      %p216 = scmp.eq.s32.totalorder %s23, 7
      %p217 = por %p215, %p216
      %p219 = scmp.ne.s32.totalorder %s204, %s218
      %p220 = scmp.eq.s32.totalorder %s23, 0
      %p221 = por %p219, %p220
      %s223 = sadd.s32 %s222, 1
      %p226 = scmp.eq.s32.totalorder %s17, 7
      %p227 = scmp.ne.s32.totalorder %s222, %s224
      %p228 = scmp.eq.s32.totalorder %s17, 0
      %p229 = por %p227, %p228
      %p230 = scmp.ne.s32.totalorder %s222, %s224
      %p231 = scmp.eq.s32.totalorder %s22, 7
      %p232 = por %p230, %p231
      %p233 = scmp.ne.s32.totalorder %s224, %s225
      %p234 = scmp.eq.s32.totalorder %s22, 0
      %p235 = por %p233, %p234
      %p236 = scmp.ne.s32.totalorder %s224, %s225
      %p237 = scmp.eq.s32.totalorder %s23, 7
      %p238 = por %p236, %p237
      %p240 = scmp.ne.s32.totalorder %s225, %s239
      %p241 = scmp.eq.s32.totalorder %s23, 0
      %p242 = por %p240, %p241
      %s244 = sadd.s32 %s243, 1
      %p247 = scmp.eq.s32.totalorder %s17, 7
      %p248 = scmp.ne.s32.totalorder %s243, %s245
      %p249 = scmp.eq.s32.totalorder %s17, 0
      %p250 = por %p248, %p249
      %p251 = scmp.ne.s32.totalorder %s243, %s245
      %p252 = scmp.eq.s32.totalorder %s22, 7
      %p253 = por %p251, %p252
      %p254 = scmp.ne.s32.totalorder %s245, %s246
      %p255 = scmp.eq.s32.totalorder %s22, 0
      %p256 = por %p254, %p255
      %p257 = scmp.ne.s32.totalorder %s245, %s246
      %p258 = scmp.eq.s32.totalorder %s23, 7
      %p259 = por %p257, %p258
      %p261 = scmp.ne.s32.totalorder %s246, %s260
      %p262 = scmp.eq.s32.totalorder %s23, 0
      %p263 = por %p261, %p262
      %s265 = sadd.s32 %s264, 1
      %p268 = scmp.eq.s32.totalorder %s17, 7
      %p269 = scmp.ne.s32.totalorder %s264, %s266
      %p270 = scmp.eq.s32.totalorder %s17, 0
      %p271 = por %p269, %p270
      %p272 = scmp.ne.s32.totalorder %s264, %s266
      %p273 = scmp.eq.s32.totalorder %s22, 7
      %p274 = por %p272, %p273
      %p275 = scmp.ne.s32.totalorder %s266, %s267
      %p276 = scmp.eq.s32.totalorder %s22, 0
      %p277 = por %p275, %p276
      %p278 = scmp.ne.s32.totalorder %s266, %s267
      %p279 = scmp.eq.s32.totalorder %s23, 7
      %p280 = por %p278, %p279
      %p282 = scmp.ne.s32.totalorder %s267, %s281
      %p283 = scmp.eq.s32.totalorder %s23, 0
      %p284 = por %p282, %p283
      %p285 = scmp.le.s32.totalorder 1, %s17
      %p286 = scmp.lt.s32.totalorder %s17, 9
      %p287 = pnand %p285, %p286
      %p288 = pneg %p287
      // Predicated region
      $region9: #{vicreg_forward.1} parent=5 // pred_check
        _
      $region10: #{vicreg_forward.1} parent=5 // pred_check_branch
        %290 = sbr.rel (%p287) target = $region12
      $region11: #{vicreg_forward.1} parent=5 // pred_region
        %s291 = ssub.s32 %s17, 1
        // Predicated region
        $region13: #{vicreg_forward.1} parent=11 // pred_check
          %p292 = pneg %p130
        $region14: #{vicreg_forward.1} parent=11 // pred_check_branch
          %294 = sbr.rel (%p292) target = $region16
        $region15: #{vicreg_forward.1} parent=11 // pred_region
          _
        $region16: #{vicreg_forward.1} parent=11 // pred_fallthru
          _
        // Predicated region
        $region17: #{vicreg_forward.1} parent=11 // pred_check
          %p295 = pneg %p151
        $region18: #{vicreg_forward.1} parent=11 // pred_check_branch
          %297 = sbr.rel (%p295) target = $region20
        $region19: #{vicreg_forward.1} parent=11 // pred_region
          _
        $region20: #{vicreg_forward.1} parent=11 // pred_fallthru
          _
        // Predicated region
        $region21: #{vicreg_forward.1} parent=11 // pred_check
          %p298 = pneg %p172
        $region22: #{vicreg_forward.1} parent=11 // pred_check_branch
          %300 = sbr.rel (%p298) target = $region24
        $region23: #{vicreg_forward.1} parent=11 // pred_region
          _
        $region24: #{vicreg_forward.1} parent=11 // pred_fallthru
          _
        // Predicated region
        $region25: #{vicreg_forward.1} parent=11 // pred_check
          %p301 = pneg %p193
        $region26: #{vicreg_forward.1} parent=11 // pred_check_branch
          %303 = sbr.rel (%p301) target = $region28
        $region27: #{vicreg_forward.1} parent=11 // pred_region
          _
        $region28: #{vicreg_forward.1} parent=11 // pred_fallthru
          _
        // Predicated region
        $region29: #{vicreg_forward.1} parent=11 // pred_check
          %p304 = pneg %p214
        $region30: #{vicreg_forward.1} parent=11 // pred_check_branch
          %306 = sbr.rel (%p304) target = $region32
        $region31: #{vicreg_forward.1} parent=11 // pred_region
          _
        $region32: #{vicreg_forward.1} parent=11 // pred_fallthru
          _
        // Predicated region
        $region33: #{vicreg_forward.1} parent=11 // pred_check
          %p307 = pneg %p235
        $region34: #{vicreg_forward.1} parent=11 // pred_check_branch
          %309 = sbr.rel (%p307) target = $region36
        $region35: #{vicreg_forward.1} parent=11 // pred_region
          _
        $region36: #{vicreg_forward.1} parent=11 // pred_fallthru
          _
        // Predicated region
        $region37: #{vicreg_forward.1} parent=11 // pred_check
          %p310 = pneg %p256
        $region38: #{vicreg_forward.1} parent=11 // pred_check_branch
          %312 = sbr.rel (%p310) target = $region40
        $region39: #{vicreg_forward.1} parent=11 // pred_region
          _
        $region40: #{vicreg_forward.1} parent=11 // pred_fallthru
          _
      $region12: #{vicreg_forward.1} parent=5 // pred_fallthru
        _
      %p313 = scmp.lt.s32.totalorder %s17, 8
      // Predicated region
      $region41: #{vicreg_forward.1} parent=5 // pred_check
        %p314 = pneg %p313
      $region42: #{vicreg_forward.1} parent=5 // pred_check_branch
        %316 = sbr.rel (%p314) target = $region44
      $region43: #{vicreg_forward.1} parent=5 // pred_region
        // Predicated region
        $region45: #{vicreg_forward.1} parent=43 // pred_check
          %p317 = pneg %p51
        $region46: #{vicreg_forward.1} parent=43 // pred_check_branch
          %319 = sbr.rel (%p317) target = $region48
        $region47: #{vicreg_forward.1} parent=43 // pred_region
          %s320 = smul.u32 64, %s25
          %p321 = scmp.lt.s32.totalorder %s24, 1
          %s322 = scalar_select %p321, %s24, 1
          %p323 = scmp.lt.s32.totalorder %s320, 255
          %s324 = scalar_select %p323, %s320, 255
          %s325 = smul.addr %s324, 2
          %s326 = smul.addr %s322, 512
          %s327 = sadd.s32 %s325, %s326
          %s328 = smul.addr %s327, 4
          %s329 = scalar_lea.vmem %s0, %s328
          %s330 = smul.u32 64, %s25
        $region48: #{vicreg_forward.1} parent=43 // pred_fallthru
          _
        // Predicated region
        $region49: #{vicreg_forward.1} parent=43 // pred_check
          %p331 = pneg %p77
        $region50: #{vicreg_forward.1} parent=43 // pred_check_branch
          %333 = sbr.rel (%p331) target = $region52
        $region51: #{vicreg_forward.1} parent=43 // pred_region
          %p334 = scmp.lt.s32.totalorder %s24, 1
          %s335 = scalar_select %p334, %s24, 1
          %s336 = smul.addr %s335, 19
          %s337 = smul.addr %s336, 4
          %s338 = scalar_lea.vmem %s1, %s337
        $region52: #{vicreg_forward.1} parent=43 // pred_fallthru
          _
        // Predicated region
        $region53: #{vicreg_forward.1} parent=43 // pred_check
          %p339 = pneg %p103
        $region54: #{vicreg_forward.1} parent=43 // pred_check_branch
          %341 = sbr.rel (%p339) target = $region56
        $region55: #{vicreg_forward.1} parent=43 // pred_region
          %p342 = scmp.lt.s32.totalorder %s24, 1
          %s343 = scalar_select %p342, %s24, 1
          %s344 = smul.addr %s343, 16
          %s345 = smul.addr %s344, 8
          %s346 = scalar_lea.vmem %s2, %s345
        $region56: #{vicreg_forward.1} parent=43 // pred_fallthru
          _
      $region44: #{vicreg_forward.1} parent=5 // pred_fallthru
        _
      %p347 = scmp.le.s32.totalorder 1, %s17
      %p348 = scmp.lt.s32.totalorder %s17, 9
      %p349 = pnand %p347, %p348
      %p350 = pneg %p349
      // Predicated region
      $region57: #{vicreg_forward.1} parent=5 // pred_check
        _
      $region58: #{vicreg_forward.1} parent=5 // pred_check_branch
        %352 = sbr.rel (%p349) target = $region60
      $region59: #{vicreg_forward.1} parent=5 // pred_region
        %s353 = ssub.s32 %s17, 1
        %s354 = smul.u32 64, %s27
        %p355 = scmp.lt.s32.totalorder %s26, 1
        %s356 = scalar_select %p355, %s26, 1
        %p357 = scmp.lt.s32.totalorder %s354, 255
        %s358 = scalar_select %p357, %s354, 255
        %s359 = smul.addr %s358, 2
        %s360 = smul.addr %s356, 512
        %s361 = sadd.s32 %s359, %s360
        %s362 = smul.addr %s361, 4
        %s363 = scalar_lea.vmem %s0, %s362
        %p364 = pneg %p57
        %p365 = pneg %p54
        %p366 = scmp.lt.s32.totalorder %s26, 1
        %s367 = scalar_select %p366, %s26, 1
        %s368 = smul.addr %s367, 19
        %s369 = smul.addr %s368, 4
        %s370 = scalar_lea.vmem %s1, %s369
        %p371 = pneg %p83
        %p372 = pneg %p80
        %p373 = scmp.lt.s32.totalorder %s26, 1
        %s374 = scalar_select %p373, %s26, 1
        %s375 = smul.addr %s374, 16
        %s376 = smul.addr %s375, 8
        %s377 = scalar_lea.vmem %s2, %s376
        %p378 = pneg %p109
        %p379 = pneg %p106
        %p380 = pneg %p130
        %p381 = pneg %p127
        %p382 = pneg %p151
        %p383 = pneg %p148
        %p384 = pneg %p172
        %p385 = pneg %p169
        %p386 = pneg %p193
        %p387 = pneg %p190
        %p388 = pneg %p214
        %p389 = pneg %p211
        %p390 = pneg %p235
        %p391 = pneg %p232
        %p392 = pneg %p256
        %p393 = pneg %p253
        %p394 = pneg %p277
        %p395 = pneg %p274
        %s396 = smul.u32 64, %s27
        %p397 = scmp.lt.s32.totalorder %s26, 1
        %s398 = scalar_select %p397, %s26, 1
        %p399 = scmp.lt.s32.totalorder %s396, 255
        %s400 = scalar_select %p399, %s396, 255
        %s401 = smul.addr %s400, 2
        %s402 = smul.addr %s398, 512
        %s403 = sadd.s32 %s401, %s402
        %s404 = smul.addr %s403, 4
        %s405 = scalar_lea.vmem %s0, %s404
        %s406 = smul.u32 64, %s27
        %p407 = scmp.lt.s32.totalorder %s26, 1
        %s408 = scalar_select %p407, %s26, 1
        %s409 = smul.addr %s408, 19
        %s410 = smul.addr %s409, 4
        %s411 = scalar_lea.vmem %s1, %s410
        %p412 = scmp.lt.s32.totalorder %s26, 1
        %s413 = scalar_select %p412, %s26, 1
        %s414 = smul.addr %s413, 16
        %s415 = smul.addr %s414, 8
        %s416 = scalar_lea.vmem %s2, %s415
        %v418 = vld [vmem:[%s405] sm:$0xff]
        %v419 = vld [vmem:[%s405 + $0x8] sm:$0xff]
        %v420 = vld [vmem:[%s405 + $0x10] sm:$0xff]
        %v421 = vld [vmem:[%s405 + $0x18] sm:$0xff]
        %v422 = vld [vmem:[%s405 + $0x20] sm:$0xff]
        %v423 = vld [vmem:[%s405 + $0x28] sm:$0xff]
        %v424 = vld [vmem:[%s405 + $0x30] sm:$0xff]
        %v425 = vld [vmem:[%s405 + $0x38] sm:$0xff]
        %v426 = vld [vmem:[%s405 + $0x40] sm:$0xff]
        %v427 = vld [vmem:[%s405 + $0x48] sm:$0xff]
        %v428 = vld [vmem:[%s405 + $0x50] sm:$0xff]
        %v429 = vld [vmem:[%s405 + $0x58] sm:$0xff]
        %v430 = vld [vmem:[%s405 + $0x60] sm:$0xff]
        %v431 = vld [vmem:[%s405 + $0x68] sm:$0xff]
        %v432 = vld [vmem:[%s405 + $0x70] sm:$0xff]
        %v433 = vld [vmem:[%s405 + $0x78] sm:$0xff]
        %v434 = vld [vmem:[%s405 + $0x80] sm:$0xff]
        %v435 = vld [vmem:[%s405 + $0x88] sm:$0xff]
        %v436 = vld [vmem:[%s405 + $0x90] sm:$0xff]
        %v437 = vld [vmem:[%s405 + $0x98] sm:$0xff]
        %v438 = vld [vmem:[%s405 + $0xa0] sm:$0xff]
        %v439 = vld [vmem:[%s405 + $0xa8] sm:$0xff]
        %v440 = vld [vmem:[%s405 + $0xb0] sm:$0xff]
        %v441 = vld [vmem:[%s405 + $0xb8] sm:$0xff]
        %v442 = vld [vmem:[%s405 + $0xc0] sm:$0xff]
        %v443 = vld [vmem:[%s405 + $0xc8] sm:$0xff]
        %v444 = vld [vmem:[%s405 + $0xd0] sm:$0xff]
        %v445 = vld [vmem:[%s405 + $0xd8] sm:$0xff]
        %v446 = vld [vmem:[%s405 + $0xe0] sm:$0xff]
        %v447 = vld [vmem:[%s405 + $0xe8] sm:$0xff]
        %v448 = vld [vmem:[%s405 + $0xf0] sm:$0xff]
        %v449 = vld [vmem:[%s405 + $0xf8] sm:$0xff]
        %v450 = vld [vmem:[%s405 + $0x100] sm:$0xff]
        %v451 = vld [vmem:[%s405 + $0x108] sm:$0xff]
        %v452 = vld [vmem:[%s405 + $0x110] sm:$0xff]
        %v453 = vld [vmem:[%s405 + $0x118] sm:$0xff]
        %v454 = vld [vmem:[%s405 + $0x120] sm:$0xff]
        %v455 = vld [vmem:[%s405 + $0x128] sm:$0xff]
        %v456 = vld [vmem:[%s405 + $0x130] sm:$0xff]
        %v457 = vld [vmem:[%s405 + $0x138] sm:$0xff]
        %v458 = vld [vmem:[%s405 + $0x140] sm:$0xff]
        %v459 = vld [vmem:[%s405 + $0x148] sm:$0xff]
        %v460 = vld [vmem:[%s405 + $0x150] sm:$0xff]
        %v461 = vld [vmem:[%s405 + $0x158] sm:$0xff]
        %v462 = vld [vmem:[%s405 + $0x160] sm:$0xff]
        %v463 = vld [vmem:[%s405 + $0x168] sm:$0xff]
        %v464 = vld [vmem:[%s405 + $0x170] sm:$0xff]
        %v465 = vld [vmem:[%s405 + $0x178] sm:$0xff]
        %v466 = vld [vmem:[%s405 + $0x180] sm:$0xff]
        %v467 = vld [vmem:[%s405 + $0x188] sm:$0xff]
        %v468 = vld [vmem:[%s405 + $0x190] sm:$0xff]
        %v469 = vld [vmem:[%s405 + $0x198] sm:$0xff]
        %v470 = vld [vmem:[%s405 + $0x1a0] sm:$0xff]
        %v471 = vld [vmem:[%s405 + $0x1a8] sm:$0xff]
        %v472 = vld [vmem:[%s405 + $0x1b0] sm:$0xff]
        %v473 = vld [vmem:[%s405 + $0x1b8] sm:$0xff]
        %v474 = vld [vmem:[%s405 + $0x1c0] sm:$0xff]
        %v475 = vld [vmem:[%s405 + $0x1c8] sm:$0xff]
        %v476 = vld [vmem:[%s405 + $0x1d0] sm:$0xff]
        %v477 = vld [vmem:[%s405 + $0x1d8] sm:$0xff]
        %v478 = vld [vmem:[%s405 + $0x1e0] sm:$0xff]
        %v479 = vld [vmem:[%s405 + $0x1e8] sm:$0xff]
        %v480 = vld [vmem:[%s405 + $0x1f0] sm:$0xff]
        %v481 = vld [vmem:[%s405 + $0x1f8] sm:$0xff]
        %v482 = vld [vmem:[%s411] sm:$0xf]
        %v483 = vld [vmem:[%s411 + $0x4] sm:$0xf]
        %v484 = vld [vmem:[%s411 + $0x8] sm:$0xf]
        %v485 = vld [vmem:[%s411 + $0xc] sm:$0xf]
        %v486 = vld [vmem:[%s411 + $0x10] sm:$0xf]
        %v487 = vld [vmem:[%s411 + $0x14] sm:$0xf]
        %v488 = vld [vmem:[%s411 + $0x18] sm:$0xf]
        %v489 = vld [vmem:[%s411 + $0x1c] sm:$0xf]
        %v490 = vld [vmem:[%s411 + $0x20] sm:$0xf]
        %v491 = vld [vmem:[%s411 + $0x24] sm:$0xf]
        %v492 = vld [vmem:[%s411 + $0x28] sm:$0xf]
        %v493 = vld [vmem:[%s411 + $0x2c] sm:$0xf]
        %v494 = vld [vmem:[%s411 + $0x30] sm:$0xf]
        %v495 = vld [vmem:[%s411 + $0x34] sm:$0xf]
        %v496 = vld [vmem:[%s411 + $0x38] sm:$0xf]
        %v497 = vld [vmem:[%s411 + $0x3c] sm:$0xf]
        %v498 = vld [vmem:[%s411 + $0x40] sm:$0xf]
        %v499 = vld [vmem:[%s411 + $0x44] sm:$0xf]
        %v500 = vld [vmem:[%s411 + $0x48] sm:$0x3]
        %v565 = vunpack.c.l.b16 %v418
        %v566 = vunpack.c.h.b16 %v418
        %v567 = vunpack.c.l.b16 %v419
        %v568 = vunpack.c.h.b16 %v419
        %v569 = vunpack.c.l.b16 %v420
        %v570 = vunpack.c.h.b16 %v420
        %v571 = vunpack.c.l.b16 %v421
        %v572 = vunpack.c.h.b16 %v421
        %v573 = vunpack.c.l.b16 %v422
        %v574 = vunpack.c.h.b16 %v422
        %v575 = vunpack.c.l.b16 %v423
        %v576 = vunpack.c.h.b16 %v423
        %v577 = vunpack.c.l.b16 %v424
        %v578 = vunpack.c.h.b16 %v424
        %v579 = vunpack.c.l.b16 %v425
        %v580 = vunpack.c.h.b16 %v425
        %v581 = vunpack.c.l.b16 %v426
        %v582 = vunpack.c.h.b16 %v426
        %v583 = vunpack.c.l.b16 %v427
        %v584 = vunpack.c.h.b16 %v427
        %v585 = vunpack.c.l.b16 %v428
        %v586 = vunpack.c.h.b16 %v428
        %v587 = vunpack.c.l.b16 %v429
        %v588 = vunpack.c.h.b16 %v429
        %v589 = vunpack.c.l.b16 %v430
        %v590 = vunpack.c.h.b16 %v430
        %v591 = vunpack.c.l.b16 %v431
        %v592 = vunpack.c.h.b16 %v431
        %v593 = vunpack.c.l.b16 %v432
        %v594 = vunpack.c.h.b16 %v432
        %v595 = vunpack.c.l.b16 %v433
        %v596 = vunpack.c.h.b16 %v433
        %v597 = vunpack.c.l.b16 %v434
        %v598 = vunpack.c.h.b16 %v434
        %v599 = vunpack.c.l.b16 %v435
        %v600 = vunpack.c.h.b16 %v435
        %v601 = vunpack.c.l.b16 %v436
        %v602 = vunpack.c.h.b16 %v436
        %v603 = vunpack.c.l.b16 %v437
        %v604 = vunpack.c.h.b16 %v437
        %v605 = vunpack.c.l.b16 %v438
        %v606 = vunpack.c.h.b16 %v438
        %v607 = vunpack.c.l.b16 %v439
        %v608 = vunpack.c.h.b16 %v439
        %v609 = vunpack.c.l.b16 %v440
        %v610 = vunpack.c.h.b16 %v440
        %v611 = vunpack.c.l.b16 %v441
        %v612 = vunpack.c.h.b16 %v441
        %v613 = vunpack.c.l.b16 %v442
        %v614 = vunpack.c.h.b16 %v442
        %v615 = vunpack.c.l.b16 %v443
        %v616 = vunpack.c.h.b16 %v443
        %v617 = vunpack.c.l.b16 %v444
        %v618 = vunpack.c.h.b16 %v444
        %v619 = vunpack.c.l.b16 %v445
        %v620 = vunpack.c.h.b16 %v445
        %v621 = vunpack.c.l.b16 %v446
        %v622 = vunpack.c.h.b16 %v446
        %v623 = vunpack.c.l.b16 %v447
        %v624 = vunpack.c.h.b16 %v447
        %v625 = vunpack.c.l.b16 %v448
        %v626 = vunpack.c.h.b16 %v448
        %v627 = vunpack.c.l.b16 %v449
        %v628 = vunpack.c.h.b16 %v449
        %v629 = vunpack.c.l.b16 %v450
        %v630 = vunpack.c.h.b16 %v450
        %v631 = vunpack.c.l.b16 %v451
        %v632 = vunpack.c.h.b16 %v451
        %v633 = vunpack.c.l.b16 %v452
        %v634 = vunpack.c.h.b16 %v452
        %v635 = vunpack.c.l.b16 %v453
        %v636 = vunpack.c.h.b16 %v453
        %v637 = vunpack.c.l.b16 %v454
        %v638 = vunpack.c.h.b16 %v454
        %v639 = vunpack.c.l.b16 %v455
        %v640 = vunpack.c.h.b16 %v455
        %v641 = vunpack.c.l.b16 %v456
        %v642 = vunpack.c.h.b16 %v456
        %v643 = vunpack.c.l.b16 %v457
        %v644 = vunpack.c.h.b16 %v457
        %v645 = vunpack.c.l.b16 %v458
        %v646 = vunpack.c.h.b16 %v458
        %v647 = vunpack.c.l.b16 %v459
        %v648 = vunpack.c.h.b16 %v459
        %v649 = vunpack.c.l.b16 %v460
        %v650 = vunpack.c.h.b16 %v460
        %v651 = vunpack.c.l.b16 %v461
        %v652 = vunpack.c.h.b16 %v461
        %v653 = vunpack.c.l.b16 %v462
        %v654 = vunpack.c.h.b16 %v462
        %v655 = vunpack.c.l.b16 %v463
        %v656 = vunpack.c.h.b16 %v463
        %v657 = vunpack.c.l.b16 %v464
        %v658 = vunpack.c.h.b16 %v464
        %v659 = vunpack.c.l.b16 %v465
        %v660 = vunpack.c.h.b16 %v465
        %v661 = vunpack.c.l.b16 %v466
        %v662 = vunpack.c.h.b16 %v466
        %v663 = vunpack.c.l.b16 %v467
        %v664 = vunpack.c.h.b16 %v467
        %v665 = vunpack.c.l.b16 %v468
        %v666 = vunpack.c.h.b16 %v468
        %v667 = vunpack.c.l.b16 %v469
        %v668 = vunpack.c.h.b16 %v469
        %v669 = vunpack.c.l.b16 %v470
        %v670 = vunpack.c.h.b16 %v470
        %v671 = vunpack.c.l.b16 %v471
        %v672 = vunpack.c.h.b16 %v471
        %v673 = vunpack.c.l.b16 %v472
        %v674 = vunpack.c.h.b16 %v472
        %v675 = vunpack.c.l.b16 %v473
        %v676 = vunpack.c.h.b16 %v473
        %v677 = vunpack.c.l.b16 %v474
        %v678 = vunpack.c.h.b16 %v474
        %v679 = vunpack.c.l.b16 %v475
        %v680 = vunpack.c.h.b16 %v475
        %v681 = vunpack.c.l.b16 %v476
        %v682 = vunpack.c.h.b16 %v476
        %v683 = vunpack.c.l.b16 %v477
        %v684 = vunpack.c.h.b16 %v477
        %v685 = vunpack.c.l.b16 %v478
        %v686 = vunpack.c.h.b16 %v478
        %v687 = vunpack.c.l.b16 %v479
        %v688 = vunpack.c.h.b16 %v479
        %v689 = vunpack.c.l.b16 %v480
        %v690 = vunpack.c.h.b16 %v480
        %v691 = vunpack.c.l.b16 %v481
        %v692 = vunpack.c.h.b16 %v481
        %v693 = vpack.c.b16 %v567, %v565
        %v694 = vpack.c.b16 %v568, %v566
        %v695 = vpack.c.b16 %v571, %v569
        %v696 = vpack.c.b16 %v572, %v570
        %v697 = vpack.c.b16 %v575, %v573
        %v698 = vpack.c.b16 %v576, %v574
        %v699 = vpack.c.b16 %v579, %v577
        %v700 = vpack.c.b16 %v580, %v578
        %v701 = vpack.c.b16 %v583, %v581
        %v702 = vpack.c.b16 %v584, %v582
        %v703 = vpack.c.b16 %v587, %v585
        %v704 = vpack.c.b16 %v588, %v586
        %v705 = vpack.c.b16 %v591, %v589
        %v706 = vpack.c.b16 %v592, %v590
        %v707 = vpack.c.b16 %v595, %v593
        %v708 = vpack.c.b16 %v596, %v594
        %v709 = vpack.c.b16 %v599, %v597
        %v710 = vpack.c.b16 %v600, %v598
        %v711 = vpack.c.b16 %v603, %v601
        %v712 = vpack.c.b16 %v604, %v602
        %v713 = vpack.c.b16 %v607, %v605
        %v714 = vpack.c.b16 %v608, %v606
        %v715 = vpack.c.b16 %v611, %v609
        %v716 = vpack.c.b16 %v612, %v610
        %v717 = vpack.c.b16 %v615, %v613
        %v718 = vpack.c.b16 %v616, %v614
        %v719 = vpack.c.b16 %v619, %v617
        %v720 = vpack.c.b16 %v620, %v618
        %v721 = vpack.c.b16 %v623, %v621
        %v722 = vpack.c.b16 %v624, %v622
        %v723 = vpack.c.b16 %v627, %v625
        %v724 = vpack.c.b16 %v628, %v626
        %v725 = vpack.c.b16 %v631, %v629
        %v726 = vpack.c.b16 %v632, %v630
        %v727 = vpack.c.b16 %v635, %v633
        %v728 = vpack.c.b16 %v636, %v634
        %v729 = vpack.c.b16 %v639, %v637
        %v730 = vpack.c.b16 %v640, %v638
        %v731 = vpack.c.b16 %v643, %v641
        %v732 = vpack.c.b16 %v644, %v642
        %v733 = vpack.c.b16 %v647, %v645
        %v734 = vpack.c.b16 %v648, %v646
        %v735 = vpack.c.b16 %v651, %v649
        %v736 = vpack.c.b16 %v652, %v650
        %v737 = vpack.c.b16 %v655, %v653
        %v738 = vpack.c.b16 %v656, %v654
        %v739 = vpack.c.b16 %v659, %v657
        %v740 = vpack.c.b16 %v660, %v658
        %v741 = vpack.c.b16 %v663, %v661
        %v742 = vpack.c.b16 %v664, %v662
        %v743 = vpack.c.b16 %v667, %v665
        %v744 = vpack.c.b16 %v668, %v666
        %v745 = vpack.c.b16 %v671, %v669
        %v746 = vpack.c.b16 %v672, %v670
        %v747 = vpack.c.b16 %v675, %v673
        %v748 = vpack.c.b16 %v676, %v674
        %v749 = vpack.c.b16 %v679, %v677
        %v750 = vpack.c.b16 %v680, %v678
        %v751 = vpack.c.b16 %v683, %v681
        %v752 = vpack.c.b16 %v684, %v682
        %v753 = vpack.c.b16 %v687, %v685
        %v754 = vpack.c.b16 %v688, %v686
        %v755 = vpack.c.b16 %v691, %v689
        %v756 = vpack.c.b16 %v692, %v690
        %v808 = vunpack.c.l.b16 %v482
        %v809 = vunpack.c.l.b16 %v483
        %v810 = vunpack.c.l.b16 %v484
        %v811 = vunpack.c.l.b16 %v485
        %v812 = vunpack.c.l.b16 %v486
        %v813 = vunpack.c.l.b16 %v487
        %v814 = vunpack.c.l.b16 %v488
        %v815 = vunpack.c.l.b16 %v489
        %v816 = vunpack.c.l.b16 %v490
        %v817 = vunpack.c.l.b16 %v491
        %v818 = vunpack.c.l.b16 %v492
        %v819 = vunpack.c.l.b16 %v493
        %v820 = vunpack.c.l.b16 %v494
        %v821 = vunpack.c.l.b16 %v495
        %v822 = vunpack.c.l.b16 %v496
        %v823 = vunpack.c.l.b16 %v497
        %v824 = vunpack.c.l.b16 %v498
        %v825 = vunpack.c.l.b16 %v499
        %v826 = vunpack.c.l.b16 %v500
        %v827 = vpack.c.b16 %v809, %v808
        %v828 = vpack.c.b16 %v811, %v810
        %v829 = vpack.c.b16 %v813, %v812
        %v830 = vpack.c.b16 %v815, %v814
        %v831 = vpack.c.b16 %v817, %v816
        %v832 = vpack.c.b16 %v819, %v818
        %v833 = vpack.c.b16 %v821, %v820
        %v834 = vpack.c.b16 %v823, %v822
        %v835 = vpack.c.b16 %v825, %v824
        %v836 = vpack.c.b16 %v826, %v826
        %vm846 = vcmask 154624
        %v848 = vsel %vm846, %v694, 0
        %v851 = vsel %vm846, %v696, 0
        %v854 = vsel %vm846, %v698, 0
        %v857 = vsel %vm846, %v700, 0
        %v860 = vsel %vm846, %v702, 0
        %v863 = vsel %vm846, %v704, 0
        %v866 = vsel %vm846, %v706, 0
        %v869 = vsel %vm846, %v708, 0
        %v872 = vsel %vm846, %v710, 0
        %v875 = vsel %vm846, %v712, 0
        %v878 = vsel %vm846, %v714, 0
        %v881 = vsel %vm846, %v716, 0
        %v884 = vsel %vm846, %v718, 0
        %v887 = vsel %vm846, %v720, 0
        %v890 = vsel %vm846, %v722, 0
        %v893 = vsel %vm846, %v724, 0
        %v896 = vsel %vm846, %v726, 0
        %v899 = vsel %vm846, %v728, 0
        %v902 = vsel %vm846, %v730, 0
        %v905 = vsel %vm846, %v732, 0
        %v908 = vsel %vm846, %v734, 0
        %v911 = vsel %vm846, %v736, 0
        %v914 = vsel %vm846, %v738, 0
        %v917 = vsel %vm846, %v740, 0
        %v920 = vsel %vm846, %v742, 0
        %v923 = vsel %vm846, %v744, 0
        %v926 = vsel %vm846, %v746, 0
        %v929 = vsel %vm846, %v748, 0
        %v932 = vsel %vm846, %v750, 0
        %v935 = vsel %vm846, %v752, 0
        %v938 = vsel %vm846, %v754, 0
        %v941 = vsel %vm846, %v756, 0
        %vm943 = vcmask 1040384
        %vm944 = vcmask 1041408
        %v945 = vsel %vm943, 4294967295, 65535
        %v946 = vsel %vm944, %v945, 0
        %v948 = vand.u32 %v836, %v946
        %950 = vmatprep.subr.bf16.mxu0 0
        %951 = vmatpush1.bf16.msra.mxu0 %v834
        %952 = vmatprep.subr.bf16.mxu0 0
        %953 = vmatpush1.bf16.msra.mxu0 %v833
        %954 = vmatprep.subr.bf16.mxu0 0
        %955 = vmatpush1.bf16.msra.mxu0 %v832
        %956 = vmatprep.subr.bf16.mxu0 0
        %957 = vmatpush1.bf16.msra.mxu0 %v831
        %958 = vmatprep.subr.bf16.mxu0 0
        %959 = vmatpush1.bf16.msra.mxu0 %v830
        %960 = vmatprep.subr.bf16.mxu0 0
        %961 = vmatpush1.bf16.msra.mxu0 %v829
        %962 = vmatprep.subr.bf16.mxu0 0
        %963 = vmatpush1.bf16.msra.mxu0 %v828
        %964 = vmatprep.subr.bf16.mxu0 0
        %965 = vmatpush1.bf16.msra.mxu0 %v827
        %966 = vmatprep.subr.bf16.mxu0 0
        %967 = vmatpush2.bf16.msra.mxu0 0
        %968 = vmatprep.subr.bf16.mxu0 0
        %969 = vmatpush2.bf16.msra.mxu0 0
        %970 = vmatprep.subr.bf16.mxu0 0
        %971 = vmatpush2.bf16.msra.mxu0 0
        %972 = vmatprep.subr.bf16.mxu0 0
        %973 = vmatpush2.bf16.msra.mxu0 0
        %974 = vmatprep.subr.bf16.mxu0 0
        %975 = vmatpush2.bf16.msra.mxu0 0
        %976 = vmatprep.subr.bf16.mxu0 0
        %977 = vmatpush2.bf16.msra.mxu0 0
        %978 = vmatprep.subr.bf16.mxu0 0
        %979 = vmatpush2.bf16.msra.mxu0 %v948
        %980 = vmatprep.subr.bf16.mxu0 0
        %981 = vmatpush2.bf16.msra.mxu0 %v835
        %982 = vmatprep.mubr.bf16.mxu0 %v848
        %983 = vmatmul.mubr.bf16.gmra.mxu0 %v693
        %v984 = vpop.f32.mrf.mxu0
        %v985 = vadd.f32 0.0, %v984
        %v986 = vpop.f32.mrf.mxu0
        %v987 = vpop.f32.mrf.mxu0
        %v988 = vadd.f32 0.0, %v987
        %v989 = vpop.f32.mrf.mxu0
        %990 = vmatprep.mubr.bf16.mxu0 %v851
        %991 = vmatmul.mubr.bf16.gmra.mxu0 %v695
        %v992 = vpop.f32.mrf.mxu0
        %v993 = vadd.f32 0.0, %v992
        %v994 = vpop.f32.mrf.mxu0
        %v995 = vpop.f32.mrf.mxu0
        %v996 = vadd.f32 0.0, %v995
        %v997 = vpop.f32.mrf.mxu0
        %998 = vmatprep.mubr.bf16.mxu0 %v854
        %999 = vmatmul.mubr.bf16.gmra.mxu0 %v697
        %v1000 = vpop.f32.mrf.mxu0
        %v1001 = vadd.f32 0.0, %v1000
        %v1002 = vpop.f32.mrf.mxu0
        %v1003 = vpop.f32.mrf.mxu0
        %v1004 = vadd.f32 0.0, %v1003
        %v1005 = vpop.f32.mrf.mxu0
        %1006 = vmatprep.mubr.bf16.mxu0 %v857
        %1007 = vmatmul.mubr.bf16.gmra.mxu0 %v699
        %v1008 = vpop.f32.mrf.mxu0
        %v1009 = vadd.f32 0.0, %v1008
        %v1010 = vpop.f32.mrf.mxu0
        %v1011 = vpop.f32.mrf.mxu0
        %v1012 = vadd.f32 0.0, %v1011
        %v1013 = vpop.f32.mrf.mxu0
        %1014 = vmatprep.mubr.bf16.mxu0 %v860
        %1015 = vmatmul.mubr.bf16.gmra.mxu0 %v701
        %v1016 = vpop.f32.mrf.mxu0
        %v1017 = vadd.f32 0.0, %v1016
        %v1018 = vpop.f32.mrf.mxu0
        %v1019 = vpop.f32.mrf.mxu0
        %v1020 = vadd.f32 0.0, %v1019
        %v1021 = vpop.f32.mrf.mxu0
        %1022 = vmatprep.mubr.bf16.mxu0 %v863
        %1023 = vmatmul.mubr.bf16.gmra.mxu0 %v703
        %v1024 = vpop.f32.mrf.mxu0
        %v1025 = vadd.f32 0.0, %v1024
        %v1026 = vpop.f32.mrf.mxu0
        %v1027 = vpop.f32.mrf.mxu0
        %v1028 = vadd.f32 0.0, %v1027
        %v1029 = vpop.f32.mrf.mxu0
        %1030 = vmatprep.mubr.bf16.mxu0 %v866
        %1031 = vmatmul.mubr.bf16.gmra.mxu0 %v705
        %v1032 = vpop.f32.mrf.mxu0
        %v1033 = vadd.f32 0.0, %v1032
        %v1034 = vpop.f32.mrf.mxu0
        %v1035 = vpop.f32.mrf.mxu0
        %v1036 = vadd.f32 0.0, %v1035
        %v1037 = vpop.f32.mrf.mxu0
        %1038 = vmatprep.mubr.bf16.mxu0 %v869
        %1039 = vmatmul.mubr.bf16.gmra.mxu0 %v707
        %v1040 = vpop.f32.mrf.mxu0
        %v1041 = vadd.f32 0.0, %v1040
        %v1042 = vpop.f32.mrf.mxu0
        %v1043 = vpop.f32.mrf.mxu0
        %v1044 = vadd.f32 0.0, %v1043
        %v1045 = vpop.f32.mrf.mxu0
        %1046 = vmatprep.mubr.bf16.mxu0 %v872
        %1047 = vmatmul.mubr.bf16.gmra.mxu0 %v709
        %v1048 = vpop.f32.mrf.mxu0
        %v1049 = vadd.f32 0.0, %v1048
        %v1050 = vpop.f32.mrf.mxu0
        %v1051 = vpop.f32.mrf.mxu0
        %v1052 = vadd.f32 0.0, %v1051
        %v1053 = vpop.f32.mrf.mxu0
        %1054 = vmatprep.mubr.bf16.mxu0 %v875
        %1055 = vmatmul.mubr.bf16.gmra.mxu0 %v711
        %v1056 = vpop.f32.mrf.mxu0
        %v1057 = vadd.f32 0.0, %v1056
        %v1058 = vpop.f32.mrf.mxu0
        %v1059 = vpop.f32.mrf.mxu0
        %v1060 = vadd.f32 0.0, %v1059
        %v1061 = vpop.f32.mrf.mxu0
        %1062 = vmatprep.mubr.bf16.mxu0 %v878
        %1063 = vmatmul.mubr.bf16.gmra.mxu0 %v713
        %v1064 = vpop.f32.mrf.mxu0
        %v1065 = vadd.f32 0.0, %v1064
        %v1066 = vpop.f32.mrf.mxu0
        %v1067 = vpop.f32.mrf.mxu0
        %v1068 = vadd.f32 0.0, %v1067
        %v1069 = vpop.f32.mrf.mxu0
        %1070 = vmatprep.mubr.bf16.mxu0 %v881
        %1071 = vmatmul.mubr.bf16.gmra.mxu0 %v715
        %v1072 = vpop.f32.mrf.mxu0
        %v1073 = vadd.f32 0.0, %v1072
        %v1074 = vpop.f32.mrf.mxu0
        %v1075 = vpop.f32.mrf.mxu0
        %v1076 = vadd.f32 0.0, %v1075
        %v1077 = vpop.f32.mrf.mxu0
        %1078 = vmatprep.mubr.bf16.mxu0 %v884
        %1079 = vmatmul.mubr.bf16.gmra.mxu0 %v717
        %v1080 = vpop.f32.mrf.mxu0
        %v1081 = vadd.f32 0.0, %v1080
        %v1082 = vpop.f32.mrf.mxu0
        %v1083 = vpop.f32.mrf.mxu0
        %v1084 = vadd.f32 0.0, %v1083
        %v1085 = vpop.f32.mrf.mxu0
        %1086 = vmatprep.mubr.bf16.mxu0 %v887
        %1087 = vmatmul.mubr.bf16.gmra.mxu0 %v719
        %v1088 = vpop.f32.mrf.mxu0
        %v1089 = vadd.f32 0.0, %v1088
        %v1090 = vpop.f32.mrf.mxu0
        %v1091 = vpop.f32.mrf.mxu0
        %v1092 = vadd.f32 0.0, %v1091
        %v1093 = vpop.f32.mrf.mxu0
        %1094 = vmatprep.mubr.bf16.mxu0 %v890
        %1095 = vmatmul.mubr.bf16.gmra.mxu0 %v721
        %v1096 = vpop.f32.mrf.mxu0
        %v1097 = vadd.f32 0.0, %v1096
        %v1098 = vpop.f32.mrf.mxu0
        %v1099 = vpop.f32.mrf.mxu0
        %v1100 = vadd.f32 0.0, %v1099
        %v1101 = vpop.f32.mrf.mxu0
        %1102 = vmatprep.mubr.bf16.mxu0 %v893
        %1103 = vmatmul.mubr.bf16.gmra.mxu0 %v723
        %v1104 = vpop.f32.mrf.mxu0
        %v1105 = vadd.f32 0.0, %v1104
        %v1106 = vpop.f32.mrf.mxu0
        %v1107 = vpop.f32.mrf.mxu0
        %v1108 = vadd.f32 0.0, %v1107
        %v1109 = vpop.f32.mrf.mxu0
        %1110 = vmatprep.mubr.bf16.mxu0 %v896
        %1111 = vmatmul.mubr.bf16.gmra.mxu0 %v725
        %v1112 = vpop.f32.mrf.mxu0
        %v1113 = vadd.f32 0.0, %v1112
        %v1114 = vpop.f32.mrf.mxu0
        %v1115 = vpop.f32.mrf.mxu0
        %v1116 = vadd.f32 0.0, %v1115
        %v1117 = vpop.f32.mrf.mxu0
        %1118 = vmatprep.mubr.bf16.mxu0 %v899
        %1119 = vmatmul.mubr.bf16.gmra.mxu0 %v727
        %v1120 = vpop.f32.mrf.mxu0
        %v1121 = vadd.f32 0.0, %v1120
        %v1122 = vpop.f32.mrf.mxu0
        %v1123 = vpop.f32.mrf.mxu0
        %v1124 = vadd.f32 0.0, %v1123
        %v1125 = vpop.f32.mrf.mxu0
        %1126 = vmatprep.mubr.bf16.mxu0 %v902
        %1127 = vmatmul.mubr.bf16.gmra.mxu0 %v729
        %v1128 = vpop.f32.mrf.mxu0
        %v1129 = vadd.f32 0.0, %v1128
        %v1130 = vpop.f32.mrf.mxu0
        %v1131 = vpop.f32.mrf.mxu0
        %v1132 = vadd.f32 0.0, %v1131
        %v1133 = vpop.f32.mrf.mxu0
        %1134 = vmatprep.mubr.bf16.mxu0 %v905
        %1135 = vmatmul.mubr.bf16.gmra.mxu0 %v731
        %v1136 = vpop.f32.mrf.mxu0
        %v1137 = vadd.f32 0.0, %v1136
        %v1138 = vpop.f32.mrf.mxu0
        %v1139 = vpop.f32.mrf.mxu0
        %v1140 = vadd.f32 0.0, %v1139
        %v1141 = vpop.f32.mrf.mxu0
        %1142 = vmatprep.mubr.bf16.mxu0 %v908
        %1143 = vmatmul.mubr.bf16.gmra.mxu0 %v733
        %v1144 = vpop.f32.mrf.mxu0
        %v1145 = vadd.f32 0.0, %v1144
        %v1146 = vpop.f32.mrf.mxu0
        %v1147 = vpop.f32.mrf.mxu0
        %v1148 = vadd.f32 0.0, %v1147
        %v1149 = vpop.f32.mrf.mxu0
        %1150 = vmatprep.mubr.bf16.mxu0 %v911
        %1151 = vmatmul.mubr.bf16.gmra.mxu0 %v735
        %v1152 = vpop.f32.mrf.mxu0
        %v1153 = vadd.f32 0.0, %v1152
        %v1154 = vpop.f32.mrf.mxu0
        %v1155 = vpop.f32.mrf.mxu0
        %v1156 = vadd.f32 0.0, %v1155
        %v1157 = vpop.f32.mrf.mxu0
        %1158 = vmatprep.mubr.bf16.mxu0 %v914
        %1159 = vmatmul.mubr.bf16.gmra.mxu0 %v737
        %v1160 = vpop.f32.mrf.mxu0
        %v1161 = vadd.f32 0.0, %v1160
        %v1162 = vpop.f32.mrf.mxu0
        %v1163 = vpop.f32.mrf.mxu0
        %v1164 = vadd.f32 0.0, %v1163
        %v1165 = vpop.f32.mrf.mxu0
        %1166 = vmatprep.mubr.bf16.mxu0 %v917
        %1167 = vmatmul.mubr.bf16.gmra.mxu0 %v739
        %v1168 = vpop.f32.mrf.mxu0
        %v1169 = vadd.f32 0.0, %v1168
        %v1170 = vpop.f32.mrf.mxu0
        %v1171 = vpop.f32.mrf.mxu0
        %v1172 = vadd.f32 0.0, %v1171
        %v1173 = vpop.f32.mrf.mxu0
        %1174 = vmatprep.mubr.bf16.mxu0 %v920
        %1175 = vmatmul.mubr.bf16.gmra.mxu0 %v741
        %v1176 = vpop.f32.mrf.mxu0
        %v1177 = vadd.f32 0.0, %v1176
        %v1178 = vpop.f32.mrf.mxu0
        %v1179 = vpop.f32.mrf.mxu0
        %v1180 = vadd.f32 0.0, %v1179
        %v1181 = vpop.f32.mrf.mxu0
        %1182 = vmatprep.mubr.bf16.mxu0 %v923
        %1183 = vmatmul.mubr.bf16.gmra.mxu0 %v743
        %v1184 = vpop.f32.mrf.mxu0
        %v1185 = vadd.f32 0.0, %v1184
        %v1186 = vpop.f32.mrf.mxu0
        %v1187 = vpop.f32.mrf.mxu0
        %v1188 = vadd.f32 0.0, %v1187
        %v1189 = vpop.f32.mrf.mxu0
        %1190 = vmatprep.mubr.bf16.mxu0 %v926
        %1191 = vmatmul.mubr.bf16.gmra.mxu0 %v745
        %v1192 = vpop.f32.mrf.mxu0
        %v1193 = vadd.f32 0.0, %v1192
        %v1194 = vpop.f32.mrf.mxu0
        %v1195 = vpop.f32.mrf.mxu0
        %v1196 = vadd.f32 0.0, %v1195
        %v1197 = vpop.f32.mrf.mxu0
        %1198 = vmatprep.mubr.bf16.mxu0 %v929
        %1199 = vmatmul.mubr.bf16.gmra.mxu0 %v747
        %v1200 = vpop.f32.mrf.mxu0
        %v1201 = vadd.f32 0.0, %v1200
        %v1202 = vpop.f32.mrf.mxu0
        %v1203 = vpop.f32.mrf.mxu0
        %v1204 = vadd.f32 0.0, %v1203
        %v1205 = vpop.f32.mrf.mxu0
        %1206 = vmatprep.mubr.bf16.mxu0 %v932
        %1207 = vmatmul.mubr.bf16.gmra.mxu0 %v749
        %v1208 = vpop.f32.mrf.mxu0
        %v1209 = vadd.f32 0.0, %v1208
        %v1210 = vpop.f32.mrf.mxu0
        %v1211 = vpop.f32.mrf.mxu0
        %v1212 = vadd.f32 0.0, %v1211
        %v1213 = vpop.f32.mrf.mxu0
        %1214 = vmatprep.mubr.bf16.mxu0 %v935
        %1215 = vmatmul.mubr.bf16.gmra.mxu0 %v751
        %v1216 = vpop.f32.mrf.mxu0
        %v1217 = vadd.f32 0.0, %v1216
        %v1218 = vpop.f32.mrf.mxu0
        %v1219 = vpop.f32.mrf.mxu0
        %v1220 = vadd.f32 0.0, %v1219
        %v1221 = vpop.f32.mrf.mxu0
        %1222 = vmatprep.mubr.bf16.mxu0 %v938
        %1223 = vmatmul.mubr.bf16.gmra.mxu0 %v753
        %v1224 = vpop.f32.mrf.mxu0
        %v1225 = vadd.f32 0.0, %v1224
        %v1226 = vpop.f32.mrf.mxu0
        %v1227 = vpop.f32.mrf.mxu0
        %v1228 = vadd.f32 0.0, %v1227
        %v1229 = vpop.f32.mrf.mxu0
        %1230 = vmatprep.mubr.bf16.mxu0 %v941
        %1231 = vmatmul.mubr.bf16.gmra.mxu0 %v755
        %v1232 = vpop.f32.mrf.mxu0
        %v1233 = vadd.f32 0.0, %v1232
        %v1234 = vpop.f32.mrf.mxu0
        %v1235 = vpop.f32.mrf.mxu0
        %v1236 = vadd.f32 0.0, %v1235
        %v1237 = vpop.f32.mrf.mxu0
        %1238 = vdwg.mxu0
        %v1239 = vmax.f32 %v985, 0.0
        %v1240 = vmax.f32 %v988, 0.0
        %v1241 = vmax.f32 %v993, 0.0
        %v1242 = vmax.f32 %v996, 0.0
        %v1243 = vmax.f32 %v1001, 0.0
        %v1244 = vmax.f32 %v1004, 0.0
        %v1245 = vmax.f32 %v1009, 0.0
        %v1246 = vmax.f32 %v1012, 0.0
        %v1247 = vmax.f32 %v1017, 0.0
        %v1248 = vmax.f32 %v1020, 0.0
        %v1249 = vmax.f32 %v1025, 0.0
        %v1250 = vmax.f32 %v1028, 0.0
        %v1251 = vmax.f32 %v1033, 0.0
        %v1252 = vmax.f32 %v1036, 0.0
        %v1253 = vmax.f32 %v1041, 0.0
        %v1254 = vmax.f32 %v1044, 0.0
        %v1255 = vmax.f32 %v1049, 0.0
        %v1256 = vmax.f32 %v1052, 0.0
        %v1257 = vmax.f32 %v1057, 0.0
        %v1258 = vmax.f32 %v1060, 0.0
        %v1259 = vmax.f32 %v1065, 0.0
        %v1260 = vmax.f32 %v1068, 0.0
        %v1261 = vmax.f32 %v1073, 0.0
        %v1262 = vmax.f32 %v1076, 0.0
        %v1263 = vmax.f32 %v1081, 0.0
        %v1264 = vmax.f32 %v1084, 0.0
        %v1265 = vmax.f32 %v1089, 0.0
        %v1266 = vmax.f32 %v1092, 0.0
        %v1267 = vmax.f32 %v1097, 0.0
        %v1268 = vmax.f32 %v1100, 0.0
        %v1269 = vmax.f32 %v1105, 0.0
        %v1270 = vmax.f32 %v1108, 0.0
        %v1271 = vmax.f32 %v1113, 0.0
        %v1272 = vmax.f32 %v1116, 0.0
        %v1273 = vmax.f32 %v1121, 0.0
        %v1274 = vmax.f32 %v1124, 0.0
        %v1275 = vmax.f32 %v1129, 0.0
        %v1276 = vmax.f32 %v1132, 0.0
        %v1277 = vmax.f32 %v1137, 0.0
        %v1278 = vmax.f32 %v1140, 0.0
        %v1279 = vmax.f32 %v1145, 0.0
        %v1280 = vmax.f32 %v1148, 0.0
        %v1281 = vmax.f32 %v1153, 0.0
        %v1282 = vmax.f32 %v1156, 0.0
        %v1283 = vmax.f32 %v1161, 0.0
        %v1284 = vmax.f32 %v1164, 0.0
        %v1285 = vmax.f32 %v1169, 0.0
        %v1286 = vmax.f32 %v1172, 0.0
        %v1287 = vmax.f32 %v1177, 0.0
        %v1288 = vmax.f32 %v1180, 0.0
        %v1289 = vmax.f32 %v1185, 0.0
        %v1290 = vmax.f32 %v1188, 0.0
        %v1291 = vmax.f32 %v1193, 0.0
        %v1292 = vmax.f32 %v1196, 0.0
        %v1293 = vmax.f32 %v1201, 0.0
        %v1294 = vmax.f32 %v1204, 0.0
        %v1295 = vmax.f32 %v1209, 0.0
        %v1296 = vmax.f32 %v1212, 0.0
        %v1297 = vmax.f32 %v1217, 0.0
        %v1298 = vmax.f32 %v1220, 0.0
        %v1299 = vmax.f32 %v1225, 0.0
        %v1300 = vmax.f32 %v1228, 0.0
        %v1301 = vmax.f32 %v1233, 0.0
        %v1302 = vmax.f32 %v1236, 0.0
        %v1303 = vadd.f32 %v1239, %v1240
        %v1304 = vadd.f32 %v1303, %v1241
        %v1305 = vadd.f32 %v1304, %v1242
        %v1306 = vadd.f32 %v1305, %v1243
        %v1307 = vadd.f32 %v1306, %v1244
        %v1308 = vadd.f32 %v1307, %v1245
        %v1309 = vadd.f32 %v1308, %v1246
        %v1310 = vadd.f32 %v1309, %v1247
        %v1311 = vadd.f32 %v1310, %v1248
        %v1312 = vadd.f32 %v1311, %v1249
        %v1313 = vadd.f32 %v1312, %v1250
        %v1314 = vadd.f32 %v1313, %v1251
        %v1315 = vadd.f32 %v1314, %v1252
        %v1316 = vadd.f32 %v1315, %v1253
        %v1317 = vadd.f32 %v1316, %v1254
        %v1318 = vadd.f32 %v1317, %v1255
        %v1319 = vadd.f32 %v1318, %v1256
        %v1320 = vadd.f32 %v1319, %v1257
        %v1321 = vadd.f32 %v1320, %v1258
        %v1322 = vadd.f32 %v1321, %v1259
        %v1323 = vadd.f32 %v1322, %v1260
        %v1324 = vadd.f32 %v1323, %v1261
        %v1325 = vadd.f32 %v1324, %v1262
        %v1326 = vadd.f32 %v1325, %v1263
        %v1327 = vadd.f32 %v1326, %v1264
        %v1328 = vadd.f32 %v1327, %v1265
        %v1329 = vadd.f32 %v1328, %v1266
        %v1330 = vadd.f32 %v1329, %v1267
        %v1331 = vadd.f32 %v1330, %v1268
        %v1332 = vadd.f32 %v1331, %v1269
        %v1333 = vadd.f32 %v1332, %v1270
        %v1334 = vrot.slane %v1333, 4
        %v1335 = vadd.f32 %v1333, %v1334
        %v1336 = vrot.slane %v1335, 2
        %v1337 = vadd.f32 %v1335, %v1336
        %v1338 = vrot.slane %v1337, 1
        %v1339 = vadd.f32 %v1337, %v1338
        %v1340 = vadd.f32 %v1271, %v1272
        %v1341 = vadd.f32 %v1340, %v1273
        %v1342 = vadd.f32 %v1341, %v1274
        %v1343 = vadd.f32 %v1342, %v1275
        %v1344 = vadd.f32 %v1343, %v1276
        %v1345 = vadd.f32 %v1344, %v1277
        %v1346 = vadd.f32 %v1345, %v1278
        %v1347 = vadd.f32 %v1346, %v1279
        %v1348 = vadd.f32 %v1347, %v1280
        %v1349 = vadd.f32 %v1348, %v1281
        %v1350 = vadd.f32 %v1349, %v1282
        %v1351 = vadd.f32 %v1350, %v1283
        %v1352 = vadd.f32 %v1351, %v1284
        %v1353 = vadd.f32 %v1352, %v1285
        %v1354 = vadd.f32 %v1353, %v1286
        %v1355 = vadd.f32 %v1354, %v1287
        %v1356 = vadd.f32 %v1355, %v1288
        %v1357 = vadd.f32 %v1356, %v1289
        %v1358 = vadd.f32 %v1357, %v1290
        %v1359 = vadd.f32 %v1358, %v1291
        %v1360 = vadd.f32 %v1359, %v1292
        %v1361 = vadd.f32 %v1360, %v1293
        %v1362 = vadd.f32 %v1361, %v1294
        %v1363 = vadd.f32 %v1362, %v1295
        %v1364 = vadd.f32 %v1363, %v1296
        %v1365 = vadd.f32 %v1364, %v1297
        %v1366 = vadd.f32 %v1365, %v1298
        %v1367 = vadd.f32 %v1366, %v1299
        %v1368 = vadd.f32 %v1367, %v1300
        %v1369 = vadd.f32 %v1368, %v1301
        %v1370 = vadd.f32 %v1369, %v1302
        %v1371 = vrot.slane %v1370, 4
        %v1372 = vadd.f32 %v1370, %v1371
        %v1373 = vrot.slane %v1372, 2
        %v1374 = vadd.f32 %v1372, %v1373
        %v1375 = vrot.slane %v1374, 1
        %v1376 = vadd.f32 %v1374, %v1375
        %v1377 = vrcp.pop 256.0
        %v1378 = vmul.f32 %v1339, %v1377
        %v1379 = vmul.f32 %v1376, %v1377
        %v1380 = vlaneseq
        %v1381 = vshrl.u32 %v1380, 7
        %s1382 = smul.u32 %s27, 2
        %v1383 = vstv %s1382
        %vm1384 = vcmp.eq.s32.totalorder %v1381, %v1383
        %v1385 = vsel %vm1384, %v1378, 0.0
        %v1386 = vadd.f32 %v1385, 0.0
        %s1387 = sadd.s32 %s1382, 1
        %v1388 = vstv %s1387
        %vm1389 = vcmp.eq.s32.totalorder %v1381, %v1388
        %v1390 = vsel %vm1389, %v1379, 0.0
        %v1391 = vadd.f32 %v1386, %v1390
        %p1392 = scmp.eq.s32.totalorder %s27, 0
        // Predicated region
        $region61: #{vicreg_forward.1} parent=59 // pred_check
          %p1393 = pneg %p1392
        $region62: #{vicreg_forward.1} parent=59 // pred_check_branch
          %1395 = sbr.rel (%p1393) target = $region64
        $region63: #{vicreg_forward.1} parent=59 // pred_region
          %1396 = vst [vmem:[#allocation2] sm:$0xff] 0.0
        $region64: #{vicreg_forward.1} parent=59 // pred_fallthru
          _
        %v1397 = vld [vmem:[#allocation2] sm:$0xff]
        %v1398 = vadd.f32 %v1397, %v1391
        %1399 = vst [vmem:[#allocation2] sm:$0xff] %v1398
        %p1400 = scmp.eq.s32.totalorder %s27, 3
        %p1401 = scmp.eq.s32.totalorder %s26, 0
        %p1402 = pnand %p1400, %p1401
        %p1403 = pneg %p1402
        // Predicated region
        $region65: #{vicreg_forward.1} parent=59 // pred_check
          _
        $region66: #{vicreg_forward.1} parent=59 // pred_check_branch
          %1405 = sbr.rel (%p1402) target = $region68
        $region67: #{vicreg_forward.1} parent=59 // pred_region
          %v1406 = vld [vmem:[#allocation2] sm:$0xff]
          %v1407 = vld [vmem:[%s416] sm:$0xff]
          %v1408 = vld [vmem:[%s416 + $0x8] sm:$0xff]
          %v1409 = vld [vmem:[%s416 + $0x10] sm:$0xff]
          %v1410 = vld [vmem:[%s416 + $0x18] sm:$0xff]
          %v1411 = vld [vmem:[%s416 + $0x20] sm:$0xff]
          %v1412 = vld [vmem:[%s416 + $0x28] sm:$0xff]
          %v1413 = vld [vmem:[%s416 + $0x30] sm:$0xff]
          %v1414 = vld [vmem:[%s416 + $0x38] sm:$0xff]
          %v1415 = vld [vmem:[%s416 + $0x40] sm:$0xff]
          %v1416 = vld [vmem:[%s416 + $0x48] sm:$0xff]
          %v1417 = vld [vmem:[%s416 + $0x50] sm:$0xff]
          %v1418 = vld [vmem:[%s416 + $0x58] sm:$0xff]
          %v1419 = vld [vmem:[%s416 + $0x60] sm:$0xff]
          %v1420 = vld [vmem:[%s416 + $0x68] sm:$0xff]
          %v1421 = vld [vmem:[%s416 + $0x70] sm:$0xff]
          %v1422 = vld [vmem:[%s416 + $0x78] sm:$0xff]
          %1423 = vmatprep.subr.mxu0 0.0
          %1424 = vmatpush1.msra.mxu0 %v1422
          %1425 = vmatprep.subr.mxu0 0.0
          %1426 = vmatpush1.msra.mxu0 %v1421
          %1427 = vmatprep.subr.mxu0 0.0
          %1428 = vmatpush1.msra.mxu0 %v1420
          %1429 = vmatprep.subr.mxu0 0.0
          %1430 = vmatpush1.msra.mxu0 %v1419
          %1431 = vmatprep.subr.mxu0 0.0
          %1432 = vmatpush1.msra.mxu0 %v1418
          %1433 = vmatprep.subr.mxu0 0.0
          %1434 = vmatpush1.msra.mxu0 %v1417
          %1435 = vmatprep.subr.mxu0 0.0
          %1436 = vmatpush1.msra.mxu0 %v1416
          %1437 = vmatprep.subr.mxu0 0.0
          %1438 = vmatpush1.msra.mxu0 %v1415
          %1439 = vmatprep.subr.mxu0 0.0
          %1440 = vmatpush1.msra.mxu0 %v1414
          %1441 = vmatprep.subr.mxu0 0.0
          %1442 = vmatpush1.msra.mxu0 %v1413
          %1443 = vmatprep.subr.mxu0 0.0
          %1444 = vmatpush1.msra.mxu0 %v1412
          %1445 = vmatprep.subr.mxu0 0.0
          %1446 = vmatpush1.msra.mxu0 %v1411
          %1447 = vmatprep.subr.mxu0 0.0
          %1448 = vmatpush1.msra.mxu0 %v1410
          %1449 = vmatprep.subr.mxu0 0.0
          %1450 = vmatpush1.msra.mxu0 %v1409
          %1451 = vmatprep.subr.mxu0 0.0
          %1452 = vmatpush1.msra.mxu0 %v1408
          %1453 = vmatprep.subr.mxu0 0.0
          %1454 = vmatpush1.msra.mxu0 %v1407
          %1455 = vmatprep.subr.mxu0 0.0
          %1456 = vmatpush2.msra.mxu0 0.0
          %1457 = vmatprep.subr.mxu0 0.0
          %1458 = vmatpush2.msra.mxu0 0.0
          %1459 = vmatprep.subr.mxu0 0.0
          %1460 = vmatpush2.msra.mxu0 0.0
          %1461 = vmatprep.subr.mxu0 0.0
          %1462 = vmatpush2.msra.mxu0 0.0
          %1463 = vmatprep.subr.mxu0 0.0
          %1464 = vmatpush2.msra.mxu0 0.0
          %1465 = vmatprep.subr.mxu0 0.0
          %1466 = vmatpush2.msra.mxu0 0.0
          %1467 = vmatprep.subr.mxu0 0.0
          %1468 = vmatpush2.msra.mxu0 0.0
          %1469 = vmatprep.subr.mxu0 0.0
          %1470 = vmatpush2.msra.mxu0 0.0
          %1471 = vmatprep.subr.mxu0 0.0
          %1472 = vmatpush2.msra.mxu0 0.0
          %1473 = vmatprep.subr.mxu0 0.0
          %1474 = vmatpush2.msra.mxu0 0.0
          %1475 = vmatprep.subr.mxu0 0.0
          %1476 = vmatpush2.msra.mxu0 0.0
          %1477 = vmatprep.subr.mxu0 0.0
          %1478 = vmatpush2.msra.mxu0 0.0
          %1479 = vmatprep.subr.mxu0 0.0
          %1480 = vmatpush2.msra.mxu0 0.0
          %1481 = vmatprep.subr.mxu0 0.0
          %1482 = vmatpush2.msra.mxu0 0.0
          %1483 = vmatprep.subr.mxu0 0.0
          %1484 = vmatpush2.msra.mxu0 0.0
          %1485 = vmatprep.subr.mxu0 0.0
          %1486 = vmatpush2.msra.mxu0 0.0
          %1487 = vmatprep.mubr.f32.mxu0 0.0
          %1488 = vmatmul.mubr.f32.gmra.mxu0 %v1406
          %v1489 = vpop.f32.mrf.mxu0
          %v1490 = vadd.f32 0.0, %v1489
          %v1491 = vpop.f32.mrf.mxu0
          %1492 = vdwg.mxu0
          %1493 = vst [vmem:[#allocation3] sm:$0xff] %v1490
        $region68: #{vicreg_forward.1} parent=59 // pred_fallthru
          _
        %p1494 = scmp.eq.s32.totalorder %s26, 1
        %p1495 = pnand %p1400, %p1494
        %p1496 = pneg %p1495
        // Predicated region
        $region69: #{vicreg_forward.1} parent=59 // pred_check
          _
        $region70: #{vicreg_forward.1} parent=59 // pred_check_branch
          %1498 = sbr.rel (%p1495) target = $region72
        $region71: #{vicreg_forward.1} parent=59 // pred_region
          %v1499 = vld [vmem:[#allocation2] sm:$0xff]
          %v1500 = vld [vmem:[%s416] sm:$0xff]
          %v1501 = vld [vmem:[%s416 + $0x8] sm:$0xff]
          %v1502 = vld [vmem:[%s416 + $0x10] sm:$0xff]
          %v1503 = vld [vmem:[%s416 + $0x18] sm:$0xff]
          %v1504 = vld [vmem:[%s416 + $0x20] sm:$0xff]
          %v1505 = vld [vmem:[%s416 + $0x28] sm:$0xff]
          %v1506 = vld [vmem:[%s416 + $0x30] sm:$0xff]
          %v1507 = vld [vmem:[%s416 + $0x38] sm:$0xff]
          %v1508 = vld [vmem:[%s416 + $0x40] sm:$0xff]
          %v1509 = vld [vmem:[%s416 + $0x48] sm:$0xff]
          %v1510 = vld [vmem:[%s416 + $0x50] sm:$0xff]
          %v1511 = vld [vmem:[%s416 + $0x58] sm:$0xff]
          %v1512 = vld [vmem:[%s416 + $0x60] sm:$0xff]
          %v1513 = vld [vmem:[%s416 + $0x68] sm:$0xff]
          %v1514 = vld [vmem:[%s416 + $0x70] sm:$0xff]
          %v1515 = vld [vmem:[%s416 + $0x78] sm:$0xff]
          %1516 = vmatprep.subr.mxu0 0.0
          %1517 = vmatpush1.msra.mxu0 %v1515
          %1518 = vmatprep.subr.mxu0 0.0
          %1519 = vmatpush1.msra.mxu0 %v1514
          %1520 = vmatprep.subr.mxu0 0.0
          %1521 = vmatpush1.msra.mxu0 %v1513
          %1522 = vmatprep.subr.mxu0 0.0
          %1523 = vmatpush1.msra.mxu0 %v1512
          %1524 = vmatprep.subr.mxu0 0.0
          %1525 = vmatpush1.msra.mxu0 %v1511
          %1526 = vmatprep.subr.mxu0 0.0
          %1527 = vmatpush1.msra.mxu0 %v1510
          %1528 = vmatprep.subr.mxu0 0.0
          %1529 = vmatpush1.msra.mxu0 %v1509
          %1530 = vmatprep.subr.mxu0 0.0
          %1531 = vmatpush1.msra.mxu0 %v1508
          %1532 = vmatprep.subr.mxu0 0.0
          %1533 = vmatpush1.msra.mxu0 %v1507
          %1534 = vmatprep.subr.mxu0 0.0
          %1535 = vmatpush1.msra.mxu0 %v1506
          %1536 = vmatprep.subr.mxu0 0.0
          %1537 = vmatpush1.msra.mxu0 %v1505
          %1538 = vmatprep.subr.mxu0 0.0
          %1539 = vmatpush1.msra.mxu0 %v1504
          %1540 = vmatprep.subr.mxu0 0.0
          %1541 = vmatpush1.msra.mxu0 %v1503
          %1542 = vmatprep.subr.mxu0 0.0
          %1543 = vmatpush1.msra.mxu0 %v1502
          %1544 = vmatprep.subr.mxu0 0.0
          %1545 = vmatpush1.msra.mxu0 %v1501
          %1546 = vmatprep.subr.mxu0 0.0
          %1547 = vmatpush1.msra.mxu0 %v1500
          %1548 = vmatprep.subr.mxu0 0.0
          %1549 = vmatpush2.msra.mxu0 0.0
          %1550 = vmatprep.subr.mxu0 0.0
          %1551 = vmatpush2.msra.mxu0 0.0
          %1552 = vmatprep.subr.mxu0 0.0
          %1553 = vmatpush2.msra.mxu0 0.0
          %1554 = vmatprep.subr.mxu0 0.0
          %1555 = vmatpush2.msra.mxu0 0.0
          %1556 = vmatprep.subr.mxu0 0.0
          %1557 = vmatpush2.msra.mxu0 0.0
          %1558 = vmatprep.subr.mxu0 0.0
          %1559 = vmatpush2.msra.mxu0 0.0
          %1560 = vmatprep.subr.mxu0 0.0
          %1561 = vmatpush2.msra.mxu0 0.0
          %1562 = vmatprep.subr.mxu0 0.0
          %1563 = vmatpush2.msra.mxu0 0.0
          %1564 = vmatprep.subr.mxu0 0.0
          %1565 = vmatpush2.msra.mxu0 0.0
          %1566 = vmatprep.subr.mxu0 0.0
          %1567 = vmatpush2.msra.mxu0 0.0
          %1568 = vmatprep.subr.mxu0 0.0
          %1569 = vmatpush2.msra.mxu0 0.0
          %1570 = vmatprep.subr.mxu0 0.0
          %1571 = vmatpush2.msra.mxu0 0.0
          %1572 = vmatprep.subr.mxu0 0.0
          %1573 = vmatpush2.msra.mxu0 0.0
          %1574 = vmatprep.subr.mxu0 0.0
          %1575 = vmatpush2.msra.mxu0 0.0
          %1576 = vmatprep.subr.mxu0 0.0
          %1577 = vmatpush2.msra.mxu0 0.0
          %1578 = vmatprep.subr.mxu0 0.0
          %1579 = vmatpush2.msra.mxu0 0.0
          %1580 = vmatprep.mubr.f32.mxu0 0.0
          %1581 = vmatmul.mubr.f32.gmra.mxu0 %v1499
          %v1582 = vpop.f32.mrf.mxu0
          %v1583 = vadd.f32 0.0, %v1582
          %v1584 = vpop.f32.mrf.mxu0
          %1585 = vdwg.mxu0
          %1586 = vst [vmem:[#allocation3 + $0x8] sm:$0xff] %v1583
          %v1587 = vld [vmem:[#allocation3] sm:$0xff]
          %v1588 = vld [vmem:[#allocation3 + $0x8] sm:$0xff]
          %v1589 = vld [vmem:[%s3] sm:$0xff]
          %v1590 = vld [vmem:[%s3 + $0x8] sm:$0xff]
          %v1591 = vld [vmem:[%s3 + $0x10] sm:$0xff]
          %v1592 = vld [vmem:[%s3 + $0x18] sm:$0xff]
          %v1593 = vld [vmem:[%s3 + $0x20] sm:$0xff]
          %v1594 = vld [vmem:[%s3 + $0x28] sm:$0xff]
          %v1595 = vld [vmem:[%s3 + $0x30] sm:$0xff]
          %v1596 = vld [vmem:[%s3 + $0x38] sm:$0xff]
          %v1597 = vld [vmem:[%s3 + $0x40] sm:$0xff]
          %v1598 = vld [vmem:[%s3 + $0x48] sm:$0xff]
          %v1599 = vld [vmem:[%s3 + $0x50] sm:$0xff]
          %v1600 = vld [vmem:[%s3 + $0x58] sm:$0xff]
          %v1601 = vld [vmem:[%s3 + $0x60] sm:$0xff]
          %v1602 = vld [vmem:[%s3 + $0x68] sm:$0xff]
          %v1603 = vld [vmem:[%s3 + $0x70] sm:$0xff]
          %v1604 = vld [vmem:[%s3 + $0x78] sm:$0xff]
          %1605 = vmatprep.subr.mxu0 0.0
          %1606 = vmatpush1.msra.mxu0 %v1604
          %1607 = vmatprep.subr.mxu0 0.0
          %1608 = vmatpush1.msra.mxu0 %v1603
          %1609 = vmatprep.subr.mxu0 0.0
          %1610 = vmatpush1.msra.mxu0 %v1602
          %1611 = vmatprep.subr.mxu0 0.0
          %1612 = vmatpush1.msra.mxu0 %v1601
          %1613 = vmatprep.subr.mxu0 0.0
          %1614 = vmatpush1.msra.mxu0 %v1600
          %1615 = vmatprep.subr.mxu0 0.0
          %1616 = vmatpush1.msra.mxu0 %v1599
          %1617 = vmatprep.subr.mxu0 0.0
          %1618 = vmatpush1.msra.mxu0 %v1598
          %1619 = vmatprep.subr.mxu0 0.0
          %1620 = vmatpush1.msra.mxu0 %v1597
          %1621 = vmatprep.subr.mxu0 0.0
          %1622 = vmatpush1.msra.mxu0 %v1596
          %1623 = vmatprep.subr.mxu0 0.0
          %1624 = vmatpush1.msra.mxu0 %v1595
          %1625 = vmatprep.subr.mxu0 0.0
          %1626 = vmatpush1.msra.mxu0 %v1594
          %1627 = vmatprep.subr.mxu0 0.0
          %1628 = vmatpush1.msra.mxu0 %v1593
          %1629 = vmatprep.subr.mxu0 0.0
          %1630 = vmatpush1.msra.mxu0 %v1592
          %1631 = vmatprep.subr.mxu0 0.0
          %1632 = vmatpush1.msra.mxu0 %v1591
          %1633 = vmatprep.subr.mxu0 0.0
          %1634 = vmatpush1.msra.mxu0 %v1590
          %1635 = vmatprep.subr.mxu0 0.0
          %1636 = vmatpush1.msra.mxu0 %v1589
          %1637 = vmatprep.subr.mxu0 0.0
          %1638 = vmatpush2.msra.mxu0 0.0
          %1639 = vmatprep.subr.mxu0 0.0
          %1640 = vmatpush2.msra.mxu0 0.0
          %1641 = vmatprep.subr.mxu0 0.0
          %1642 = vmatpush2.msra.mxu0 0.0
          %1643 = vmatprep.subr.mxu0 0.0
          %1644 = vmatpush2.msra.mxu0 0.0
          %1645 = vmatprep.subr.mxu0 0.0
          %1646 = vmatpush2.msra.mxu0 0.0
          %1647 = vmatprep.subr.mxu0 0.0
          %1648 = vmatpush2.msra.mxu0 0.0
          %1649 = vmatprep.subr.mxu0 0.0
          %1650 = vmatpush2.msra.mxu0 0.0
          %1651 = vmatprep.subr.mxu0 0.0
          %1652 = vmatpush2.msra.mxu0 0.0
          %1653 = vmatprep.subr.mxu0 0.0
          %1654 = vmatpush2.msra.mxu0 0.0
          %1655 = vmatprep.subr.mxu0 0.0
          %1656 = vmatpush2.msra.mxu0 0.0
          %1657 = vmatprep.subr.mxu0 0.0
          %1658 = vmatpush2.msra.mxu0 0.0
          %1659 = vmatprep.subr.mxu0 0.0
          %1660 = vmatpush2.msra.mxu0 0.0
          %1661 = vmatprep.subr.mxu0 0.0
          %1662 = vmatpush2.msra.mxu0 0.0
          %1663 = vmatprep.subr.mxu0 0.0
          %1664 = vmatpush2.msra.mxu0 0.0
          %1665 = vmatprep.subr.mxu0 0.0
          %1666 = vmatpush2.msra.mxu0 0.0
          %1667 = vmatprep.subr.mxu0 0.0
          %1668 = vmatpush2.msra.mxu0 0.0
          %1669 = vmatprep.mubr.f32.mxu0 0.0
          %1670 = vmatmul.mubr.f32.gmra.mxu0 %v1587
          %v1671 = vpop.f32.mrf.mxu0
          %v1672 = vadd.f32 0.0, %v1671
          %v1673 = vpop.f32.mrf.mxu0
          %1674 = vmatprep.mubr.f32.mxu0 0.0
          %1675 = vmatmul.mubr.f32.gmra.mxu0 %v1588
          %v1676 = vpop.f32.mrf.mxu0
          %v1677 = vadd.f32 0.0, %v1676
          %v1678 = vpop.f32.mrf.mxu0
          %1679 = vdwg.mxu0
          %v1680 = vrot.slane %v1672, 4
          %v1681 = vadd.f32 %v1672, %v1680
          %v1682 = vrot.slane %v1681, 2
          %v1683 = vadd.f32 %v1681, %v1682
          %v1684 = vrot.slane %v1683, 1
          %v1685 = vadd.f32 %v1683, %v1684
          %v1686 = vrot.slane %v1677, 4
          %v1687 = vadd.f32 %v1677, %v1686
          %v1688 = vrot.slane %v1687, 2
          %v1689 = vadd.f32 %v1687, %v1688
          %v1690 = vrot.slane %v1689, 1
          %v1691 = vadd.f32 %v1689, %v1690
          %v1692 = vrcp.pop 8.0
          %v1693 = vmul.f32 %v1685, %v1692
          %v1694 = vmul.f32 %v1691, %v1692
          %v1695 = vsub.f32 %v1672, %v1693
          %v1696 = vsub.f32 %v1677, %v1694
          %v1697 = vmul.f32 %v1695, %v1695
          %v1698 = vmul.f32 %v1696, %v1696
          %v1699 = vrot.slane %v1697, 4
          %v1700 = vadd.f32 %v1697, %v1699
          %v1701 = vrot.slane %v1700, 2
          %v1702 = vadd.f32 %v1700, %v1701
          %v1703 = vrot.slane %v1702, 1
          %v1704 = vadd.f32 %v1702, %v1703
          %v1705 = vrot.slane %v1698, 4
          %v1706 = vadd.f32 %v1698, %v1705
          %v1707 = vrot.slane %v1706, 2
          %v1708 = vadd.f32 %v1706, %v1707
          %v1709 = vrot.slane %v1708, 1
          %v1710 = vadd.f32 %v1708, %v1709
          %v1711 = vmul.f32 %v1704, %v1692
          %v1712 = vmul.f32 %v1710, %v1692
          %v1713 = vadd.f32 %v1711, 1e-05
          %v1714 = vadd.f32 %v1712, 1e-05
          %v1715 = vrsqrt.pop %v1713
          %v1716 = vrsqrt.pop %v1714
          %v1717 = vmul.f32 %v1695, %v1715
          %v1718 = vmul.f32 %v1696, %v1716
          %v1719 = vld [vmem:[%s4] sm:$0x1]
          %v1721 = vlaneseq
          %v1722 = vshrl.u32 %v1721, 7
          %v1723 = vsub.s32 0, %v1722
          %v1724 = vrot.slane %v1719, %v1723
          %v1726 = vmul.f32 %v1717, %v1724
          %v1727 = vmul.f32 %v1718, %v1724
          %v1728 = vld [vmem:[%s5] sm:$0x1]
          %v1730 = vlaneseq
          %v1731 = vshrl.u32 %v1730, 7
          %v1732 = vsub.s32 0, %v1731
          %v1733 = vrot.slane %v1728, %v1732
          %v1735 = vadd.f32 %v1726, %v1733
          %v1736 = vadd.f32 %v1727, %v1733
          %v1737 = vmax.f32 %v1735, 0.0
          %v1738 = vmax.f32 %v1736, 0.0
          %v1739 = vld [vmem:[%s6] sm:$0xff]
          %v1740 = vld [vmem:[%s6 + $0x8] sm:$0xff]
          %v1741 = vld [vmem:[%s6 + $0x10] sm:$0xff]
          %v1742 = vld [vmem:[%s6 + $0x18] sm:$0xff]
          %v1743 = vld [vmem:[%s6 + $0x20] sm:$0xff]
          %v1744 = vld [vmem:[%s6 + $0x28] sm:$0xff]
          %v1745 = vld [vmem:[%s6 + $0x30] sm:$0xff]
          %v1746 = vld [vmem:[%s6 + $0x38] sm:$0xff]
          %v1747 = vld [vmem:[%s6 + $0x40] sm:$0xff]
          %v1748 = vld [vmem:[%s6 + $0x48] sm:$0xff]
          %v1749 = vld [vmem:[%s6 + $0x50] sm:$0xff]
          %v1750 = vld [vmem:[%s6 + $0x58] sm:$0xff]
          %v1751 = vld [vmem:[%s6 + $0x60] sm:$0xff]
          %v1752 = vld [vmem:[%s6 + $0x68] sm:$0xff]
          %v1753 = vld [vmem:[%s6 + $0x70] sm:$0xff]
          %v1754 = vld [vmem:[%s6 + $0x78] sm:$0xff]
          %1755 = vmatprep.subr.mxu0 0.0
          %1756 = vmatpush1.msra.mxu0 %v1754
          %1757 = vmatprep.subr.mxu0 0.0
          %1758 = vmatpush1.msra.mxu0 %v1753
          %1759 = vmatprep.subr.mxu0 0.0
          %1760 = vmatpush1.msra.mxu0 %v1752
          %1761 = vmatprep.subr.mxu0 0.0
          %1762 = vmatpush1.msra.mxu0 %v1751
          %1763 = vmatprep.subr.mxu0 0.0
          %1764 = vmatpush1.msra.mxu0 %v1750
          %1765 = vmatprep.subr.mxu0 0.0
          %1766 = vmatpush1.msra.mxu0 %v1749
          %1767 = vmatprep.subr.mxu0 0.0
          %1768 = vmatpush1.msra.mxu0 %v1748
          %1769 = vmatprep.subr.mxu0 0.0
          %1770 = vmatpush1.msra.mxu0 %v1747
          %1771 = vmatprep.subr.mxu0 0.0
          %1772 = vmatpush1.msra.mxu0 %v1746
          %1773 = vmatprep.subr.mxu0 0.0
          %1774 = vmatpush1.msra.mxu0 %v1745
          %1775 = vmatprep.subr.mxu0 0.0
          %1776 = vmatpush1.msra.mxu0 %v1744
          %1777 = vmatprep.subr.mxu0 0.0
          %1778 = vmatpush1.msra.mxu0 %v1743
          %1779 = vmatprep.subr.mxu0 0.0
          %1780 = vmatpush1.msra.mxu0 %v1742
          %1781 = vmatprep.subr.mxu0 0.0
          %1782 = vmatpush1.msra.mxu0 %v1741
          %1783 = vmatprep.subr.mxu0 0.0
          %1784 = vmatpush1.msra.mxu0 %v1740
          %1785 = vmatprep.subr.mxu0 0.0
          %1786 = vmatpush1.msra.mxu0 %v1739
          %1787 = vmatprep.subr.mxu0 0.0
          %1788 = vmatpush2.msra.mxu0 0.0
          %1789 = vmatprep.subr.mxu0 0.0
          %1790 = vmatpush2.msra.mxu0 0.0
          %1791 = vmatprep.subr.mxu0 0.0
          %1792 = vmatpush2.msra.mxu0 0.0
          %1793 = vmatprep.subr.mxu0 0.0
          %1794 = vmatpush2.msra.mxu0 0.0
          %1795 = vmatprep.subr.mxu0 0.0
          %1796 = vmatpush2.msra.mxu0 0.0
          %1797 = vmatprep.subr.mxu0 0.0
          %1798 = vmatpush2.msra.mxu0 0.0
          %1799 = vmatprep.subr.mxu0 0.0
          %1800 = vmatpush2.msra.mxu0 0.0
          %1801 = vmatprep.subr.mxu0 0.0
          %1802 = vmatpush2.msra.mxu0 0.0
          %1803 = vmatprep.subr.mxu0 0.0
          %1804 = vmatpush2.msra.mxu0 0.0
          %1805 = vmatprep.subr.mxu0 0.0
          %1806 = vmatpush2.msra.mxu0 0.0
          %1807 = vmatprep.subr.mxu0 0.0
          %1808 = vmatpush2.msra.mxu0 0.0
          %1809 = vmatprep.subr.mxu0 0.0
          %1810 = vmatpush2.msra.mxu0 0.0
          %1811 = vmatprep.subr.mxu0 0.0
          %1812 = vmatpush2.msra.mxu0 0.0
          %1813 = vmatprep.subr.mxu0 0.0
          %1814 = vmatpush2.msra.mxu0 0.0
          %1815 = vmatprep.subr.mxu0 0.0
          %1816 = vmatpush2.msra.mxu0 0.0
          %1817 = vmatprep.subr.mxu0 0.0
          %1818 = vmatpush2.msra.mxu0 0.0
          %1819 = vmatprep.mubr.f32.mxu0 0.0
          %1820 = vmatmul.mubr.f32.gmra.mxu0 %v1737
          %v1821 = vpop.f32.mrf.mxu0
          %v1822 = vadd.f32 0.0, %v1821
          %v1823 = vpop.f32.mrf.mxu0
          %1824 = vmatprep.mubr.f32.mxu0 0.0
          %1825 = vmatmul.mubr.f32.gmra.mxu0 %v1738
          %v1826 = vpop.f32.mrf.mxu0
          %v1827 = vadd.f32 0.0, %v1826
          %v1828 = vpop.f32.mrf.mxu0
          %1829 = vdwg.mxu0
          %v1830 = vrot.slane %v1822, 4
          %v1831 = vadd.f32 %v1822, %v1830
          %v1832 = vrot.slane %v1831, 2
          %v1833 = vadd.f32 %v1831, %v1832
          %v1834 = vrot.slane %v1833, 1
          %v1835 = vadd.f32 %v1833, %v1834
          %v1836 = vrot.slane %v1827, 4
          %v1837 = vadd.f32 %v1827, %v1836
          %v1838 = vrot.slane %v1837, 2
          %v1839 = vadd.f32 %v1837, %v1838
          %v1840 = vrot.slane %v1839, 1
          %v1841 = vadd.f32 %v1839, %v1840
          %v1842 = vmul.f32 %v1835, %v1692
          %v1843 = vmul.f32 %v1841, %v1692
          %v1844 = vsub.f32 %v1822, %v1842
          %v1845 = vsub.f32 %v1827, %v1843
          %v1846 = vmul.f32 %v1844, %v1844
          %v1847 = vmul.f32 %v1845, %v1845
          %v1848 = vrot.slane %v1846, 4
          %v1849 = vadd.f32 %v1846, %v1848
          %v1850 = vrot.slane %v1849, 2
          %v1851 = vadd.f32 %v1849, %v1850
          %v1852 = vrot.slane %v1851, 1
          %v1853 = vadd.f32 %v1851, %v1852
          %v1854 = vrot.slane %v1847, 4
          %v1855 = vadd.f32 %v1847, %v1854
          %v1856 = vrot.slane %v1855, 2
          %v1857 = vadd.f32 %v1855, %v1856
          %v1858 = vrot.slane %v1857, 1
          %v1859 = vadd.f32 %v1857, %v1858
          %v1860 = vmul.f32 %v1853, %v1692
          %v1861 = vmul.f32 %v1859, %v1692
          %v1862 = vadd.f32 %v1860, 1e-05
          %v1863 = vadd.f32 %v1861, 1e-05
          %v1864 = vrsqrt.pop %v1862
          %v1865 = vrsqrt.pop %v1863
          %v1866 = vmul.f32 %v1844, %v1864
          %v1867 = vmul.f32 %v1845, %v1865
          %v1868 = vld [vmem:[%s7] sm:$0x1]
          %v1870 = vlaneseq
          %v1871 = vshrl.u32 %v1870, 7
          %v1872 = vsub.s32 0, %v1871
          %v1873 = vrot.slane %v1868, %v1872
          %v1875 = vmul.f32 %v1866, %v1873
          %v1876 = vmul.f32 %v1867, %v1873
          %v1877 = vld [vmem:[%s8] sm:$0x1]
          %v1879 = vlaneseq
          %v1880 = vshrl.u32 %v1879, 7
          %v1881 = vsub.s32 0, %v1880
          %v1882 = vrot.slane %v1877, %v1881
          %v1884 = vadd.f32 %v1875, %v1882
          %v1885 = vadd.f32 %v1876, %v1882
          %v1886 = vmax.f32 %v1884, 0.0
          %v1887 = vmax.f32 %v1885, 0.0
          %v1888 = vld [vmem:[%s9] sm:$0xff]
          %v1889 = vld [vmem:[%s9 + $0x8] sm:$0xff]
          %v1890 = vld [vmem:[%s9 + $0x10] sm:$0xff]
          %v1891 = vld [vmem:[%s9 + $0x18] sm:$0xff]
          %v1892 = vld [vmem:[%s9 + $0x20] sm:$0xff]
          %v1893 = vld [vmem:[%s9 + $0x28] sm:$0xff]
          %v1894 = vld [vmem:[%s9 + $0x30] sm:$0xff]
          %v1895 = vld [vmem:[%s9 + $0x38] sm:$0xff]
          %v1896 = vld [vmem:[%s9 + $0x40] sm:$0xff]
          %v1897 = vld [vmem:[%s9 + $0x48] sm:$0xff]
          %v1898 = vld [vmem:[%s9 + $0x50] sm:$0xff]
          %v1899 = vld [vmem:[%s9 + $0x58] sm:$0xff]
          %v1900 = vld [vmem:[%s9 + $0x60] sm:$0xff]
          %v1901 = vld [vmem:[%s9 + $0x68] sm:$0xff]
          %v1902 = vld [vmem:[%s9 + $0x70] sm:$0xff]
          %v1903 = vld [vmem:[%s9 + $0x78] sm:$0xff]
          %1904 = vmatprep.subr.mxu0 0.0
          %1905 = vmatpush1.msra.mxu0 %v1903
          %1906 = vmatprep.subr.mxu0 0.0
          %1907 = vmatpush1.msra.mxu0 %v1902
          %1908 = vmatprep.subr.mxu0 0.0
          %1909 = vmatpush1.msra.mxu0 %v1901
          %1910 = vmatprep.subr.mxu0 0.0
          %1911 = vmatpush1.msra.mxu0 %v1900
          %1912 = vmatprep.subr.mxu0 0.0
          %1913 = vmatpush1.msra.mxu0 %v1899
          %1914 = vmatprep.subr.mxu0 0.0
          %1915 = vmatpush1.msra.mxu0 %v1898
          %1916 = vmatprep.subr.mxu0 0.0
          %1917 = vmatpush1.msra.mxu0 %v1897
          %1918 = vmatprep.subr.mxu0 0.0
          %1919 = vmatpush1.msra.mxu0 %v1896
          %1920 = vmatprep.subr.mxu0 0.0
          %1921 = vmatpush1.msra.mxu0 %v1895
          %1922 = vmatprep.subr.mxu0 0.0
          %1923 = vmatpush1.msra.mxu0 %v1894
          %1924 = vmatprep.subr.mxu0 0.0
          %1925 = vmatpush1.msra.mxu0 %v1893
          %1926 = vmatprep.subr.mxu0 0.0
          %1927 = vmatpush1.msra.mxu0 %v1892
          %1928 = vmatprep.subr.mxu0 0.0
          %1929 = vmatpush1.msra.mxu0 %v1891
          %1930 = vmatprep.subr.mxu0 0.0
          %1931 = vmatpush1.msra.mxu0 %v1890
          %1932 = vmatprep.subr.mxu0 0.0
          %1933 = vmatpush1.msra.mxu0 %v1889
          %1934 = vmatprep.subr.mxu0 0.0
          %1935 = vmatpush1.msra.mxu0 %v1888
          %1936 = vmatprep.subr.mxu0 0.0
          %1937 = vmatpush2.msra.mxu0 0.0
          %1938 = vmatprep.subr.mxu0 0.0
          %1939 = vmatpush2.msra.mxu0 0.0
          %1940 = vmatprep.subr.mxu0 0.0
          %1941 = vmatpush2.msra.mxu0 0.0
          %1942 = vmatprep.subr.mxu0 0.0
          %1943 = vmatpush2.msra.mxu0 0.0
          %1944 = vmatprep.subr.mxu0 0.0
          %1945 = vmatpush2.msra.mxu0 0.0
          %1946 = vmatprep.subr.mxu0 0.0
          %1947 = vmatpush2.msra.mxu0 0.0
          %1948 = vmatprep.subr.mxu0 0.0
          %1949 = vmatpush2.msra.mxu0 0.0
          %1950 = vmatprep.subr.mxu0 0.0
          %1951 = vmatpush2.msra.mxu0 0.0
          %1952 = vmatprep.subr.mxu0 0.0
          %1953 = vmatpush2.msra.mxu0 0.0
          %1954 = vmatprep.subr.mxu0 0.0
          %1955 = vmatpush2.msra.mxu0 0.0
          %1956 = vmatprep.subr.mxu0 0.0
          %1957 = vmatpush2.msra.mxu0 0.0
          %1958 = vmatprep.subr.mxu0 0.0
          %1959 = vmatpush2.msra.mxu0 0.0
          %1960 = vmatprep.subr.mxu0 0.0
          %1961 = vmatpush2.msra.mxu0 0.0
          %1962 = vmatprep.subr.mxu0 0.0
          %1963 = vmatpush2.msra.mxu0 0.0
          %1964 = vmatprep.subr.mxu0 0.0
          %1965 = vmatpush2.msra.mxu0 0.0
          %1966 = vmatprep.subr.mxu0 0.0
          %1967 = vmatpush2.msra.mxu0 0.0
          %1968 = vmatprep.mubr.f32.mxu0 0.0
          %1969 = vmatmul.mubr.f32.gmra.mxu0 %v1886
          %v1970 = vpop.f32.mrf.mxu0
          %v1971 = vadd.f32 0.0, %v1970
          %v1972 = vpop.f32.mrf.mxu0
          %1973 = vmatprep.mubr.f32.mxu0 0.0
          %1974 = vmatmul.mubr.f32.gmra.mxu0 %v1887
          %v1975 = vpop.f32.mrf.mxu0
          %v1976 = vadd.f32 0.0, %v1975
          %v1977 = vpop.f32.mrf.mxu0
          %1978 = vdwg.mxu0
          %v1979 = vsub.f32 %v1971, %v1976
          %v1980 = vmul.f32 %v1979, %v1979
          %1981 = vadd.xlane.f32.xlu0 %v1980
          %v1982 = vpop.xlane.xlu0 %1981
          %v1983 = vrot.slane %v1982, 4
          %v1984 = vadd.f32 %v1982, %v1983
          %v1985 = vrot.slane %v1984, 2
          %v1986 = vadd.f32 %v1984, %v1985
          %v1987 = vrot.slane %v1986, 1
          %v1988 = vadd.f32 %v1986, %v1987
          %s1989 = vtos %v1988
          %v1990 = vrcp.pop 1024.0
          %s1991 = vtos %v1990
          %s1992 = smul.f32 %s1989, %s1991
          %v1993 = vrot.slane %v1971, 4
          %v1994 = vadd.f32 %v1971, %v1993
          %v1995 = vrot.slane %v1994, 2
          %v1996 = vadd.f32 %v1994, %v1995
          %v1997 = vrot.slane %v1996, 1
          %v1998 = vadd.f32 %v1996, %v1997
          %v1999 = vmul.f32 %v1998, %v1692
          %v2000 = vsub.f32 %v1971, %v1999
          %v2001 = vrot.slane %v1976, 4
          %v2002 = vadd.f32 %v1976, %v2001
          %v2003 = vrot.slane %v2002, 2
          %v2004 = vadd.f32 %v2002, %v2003
          %v2005 = vrot.slane %v2004, 1
          %v2006 = vadd.f32 %v2004, %v2005
          %v2007 = vmul.f32 %v2006, %v1692
          %v2008 = vsub.f32 %v1976, %v2007
          %v2009 = vmul.f32 %v2000, %v2000
          %v2010 = vrot.slane %v2009, 4
          %v2011 = vadd.f32 %v2009, %v2010
          %v2012 = vrot.slane %v2011, 2
          %v2013 = vadd.f32 %v2011, %v2012
          %v2014 = vrot.slane %v2013, 1
          %v2015 = vadd.f32 %v2013, %v2014
          %v2016 = vmul.f32 %v2015, 0.14285715
          %v2017 = vmul.f32 %v2008, %v2008
          %v2018 = vrot.slane %v2017, 4
          %v2019 = vadd.f32 %v2017, %v2018
          %v2020 = vrot.slane %v2019, 2
          %v2021 = vadd.f32 %v2019, %v2020
          %v2022 = vrot.slane %v2021, 1
          %v2023 = vadd.f32 %v2021, %v2022
          %v2024 = vmul.f32 %v2023, 0.14285715
          %v2025 = vadd.f32 %v2016, 0.0001
          %v2026 = vrsqrt.pop %v2025
          %v2027 = vmul.f32 %v2025, %v2026
          %vm2028 = vcmp.eq.f32.partialorder %v2025, inf
          %v2029 = vsel %vm2028, %v2025, %v2027
          %vm2030 = vcmp.eq.f32.partialorder %v2025, 0.0
          %v2031 = vand.u32 %v2025, 2147483648
          %v2032 = vsel %vm2030, %v2031, %v2029
          %v2033 = vadd.f32 %v2024, 0.0001
          %v2034 = vrsqrt.pop %v2033
          %v2035 = vmul.f32 %v2033, %v2034
          %vm2036 = vcmp.eq.f32.partialorder %v2033, inf
          %v2037 = vsel %vm2036, %v2033, %v2035
          %vm2038 = vcmp.eq.f32.partialorder %v2033, 0.0
          %v2039 = vand.u32 %v2033, 2147483648
          %v2040 = vsel %vm2038, %v2039, %v2037
          %v2041 = vsub.f32 1.0, %v2032
          %v2042 = vmax.f32 %v2041, 0.0
          %v2043 = vsel %vm943, %v2042, 0.0
          %2044 = vadd.xlane.f32.xlu0 %v2043
          %v2045 = vpop.xlane.xlu0 %2044
          %v2046 = vrot.slane %v2045, 4
          %v2047 = vadd.f32 %v2045, %v2046
          %v2048 = vrot.slane %v2047, 2
          %v2049 = vadd.f32 %v2047, %v2048
          %v2050 = vrot.slane %v2049, 1
          %v2051 = vadd.f32 %v2049, %v2050
          %s2052 = vtos %v2051
          %v2053 = vrcp.pop 128.0
          %s2054 = vtos %v2053
          %s2055 = smul.f32 %s2052, %s2054
          %s2056 = smul.f32 %s2055, 0.5
          %v2057 = vsub.f32 1.0, %v2040
          %v2058 = vmax.f32 %v2057, 0.0
          %v2059 = vsel %vm943, %v2058, 0.0
          %2060 = vadd.xlane.f32.xlu0 %v2059
          %v2061 = vpop.xlane.xlu0 %2060
          %v2062 = vrot.slane %v2061, 4
          %v2063 = vadd.f32 %v2061, %v2062
          %v2064 = vrot.slane %v2063, 2
          %v2065 = vadd.f32 %v2063, %v2064
          %v2066 = vrot.slane %v2065, 1
          %v2067 = vadd.f32 %v2065, %v2066
          %s2068 = vtos %v2067
          %v2069 = vrcp.pop 128.0
          %s2070 = vtos %v2069
          %s2071 = smul.f32 %s2068, %s2070
          %s2072 = smul.f32 %s2071, 0.5
          %s2073 = sadd.f32 %s2056, %s2072
          %2074 = vxpose.xlu0.b32.start [1/16] %v2000, 128
          %2075 = vxpose.xlu0.b32.cont [2/16] 0.0, 128
          %2076 = vxpose.xlu0.b32.cont [3/16] 0.0, 128
          %2077 = vxpose.xlu0.b32.cont [4/16] 0.0, 128
          %2078 = vxpose.xlu0.b32.cont [5/16] 0.0, 128
          %2079 = vxpose.xlu0.b32.cont [6/16] 0.0, 128
          %2080 = vxpose.xlu0.b32.cont [7/16] 0.0, 128
          %2081 = vxpose.xlu0.b32.cont [8/16] 0.0, 128
          %2082 = vxpose.xlu0.b32.cont [9/16] 0.0, 128
          %2083 = vxpose.xlu0.b32.cont [10/16] 0.0, 128
          %2084 = vxpose.xlu0.b32.cont [11/16] 0.0, 128
          %2085 = vxpose.xlu0.b32.cont [12/16] 0.0, 128
          %2086 = vxpose.xlu0.b32.cont [13/16] 0.0, 128
          %2087 = vxpose.xlu0.b32.cont [14/16] 0.0, 128
          %2088 = vxpose.xlu0.b32.cont [15/16] 0.0, 128
          %2089 = vxpose.xlu0.b32.end [16/16] 0.0, 128
          %v2090 = vpop.trf.xlu0
          %v2091 = vpop.trf.xlu0
          %v2092 = vpop.trf.xlu0
          %v2093 = vpop.trf.xlu0
          %v2094 = vpop.trf.xlu0
          %v2095 = vpop.trf.xlu0
          %v2096 = vpop.trf.xlu0
          %v2097 = vpop.trf.xlu0
          %v2098 = vpop.trf.xlu0
          %v2099 = vpop.trf.xlu0
          %v2100 = vpop.trf.xlu0
          %v2101 = vpop.trf.xlu0
          %v2102 = vpop.trf.xlu0
          %v2103 = vpop.trf.xlu0
          %v2104 = vpop.trf.xlu0
          %v2105 = vpop.trf.xlu0
          %vm2106 = vcmask 64512
          %v2108 = vsel %vm2106, %v2090, 0
          %v2111 = vsel %vm2106, %v2091, 0
          %v2114 = vsel %vm2106, %v2092, 0
          %v2117 = vsel %vm2106, %v2093, 0
          %v2120 = vsel %vm2106, %v2094, 0
          %v2123 = vsel %vm2106, %v2095, 0
          %v2126 = vsel %vm2106, %v2096, 0
          %v2129 = vsel %vm2106, %v2097, 0
          %v2132 = vsel %vm2106, %v2098, 0
          %v2135 = vsel %vm2106, %v2099, 0
          %v2138 = vsel %vm2106, %v2100, 0
          %v2141 = vsel %vm2106, %v2101, 0
          %v2144 = vsel %vm2106, %v2102, 0
          %v2147 = vsel %vm2106, %v2103, 0
          %v2150 = vsel %vm2106, %v2104, 0
          %v2153 = vsel %vm2106, %v2105, 0
          %2155 = vmatprep.subr.mxu0 0.0
          %2156 = vmatpush1.msra.mxu0 0.0
          %2157 = vmatprep.subr.mxu0 0.0
          %2158 = vmatpush1.msra.mxu0 0.0
          %2159 = vmatprep.subr.mxu0 0.0
          %2160 = vmatpush1.msra.mxu0 0.0
          %2161 = vmatprep.subr.mxu0 0.0
          %2162 = vmatpush1.msra.mxu0 0.0
          %2163 = vmatprep.subr.mxu0 0.0
          %2164 = vmatpush1.msra.mxu0 0.0
          %2165 = vmatprep.subr.mxu0 0.0
          %2166 = vmatpush1.msra.mxu0 0.0
          %2167 = vmatprep.subr.mxu0 0.0
          %2168 = vmatpush1.msra.mxu0 0.0
          %2169 = vmatprep.subr.mxu0 0.0
          %2170 = vmatpush1.msra.mxu0 0.0
          %2171 = vmatprep.subr.mxu0 0.0
          %2172 = vmatpush1.msra.mxu0 0.0
          %2173 = vmatprep.subr.mxu0 0.0
          %2174 = vmatpush1.msra.mxu0 0.0
          %2175 = vmatprep.subr.mxu0 0.0
          %2176 = vmatpush1.msra.mxu0 0.0
          %2177 = vmatprep.subr.mxu0 0.0
          %2178 = vmatpush1.msra.mxu0 0.0
          %2179 = vmatprep.subr.mxu0 0.0
          %2180 = vmatpush1.msra.mxu0 0.0
          %2181 = vmatprep.subr.mxu0 0.0
          %2182 = vmatpush1.msra.mxu0 0.0
          %2183 = vmatprep.subr.mxu0 0.0
          %2184 = vmatpush1.msra.mxu0 0.0
          %2185 = vmatprep.subr.mxu0 0.0
          %2186 = vmatpush1.msra.mxu0 %v2000
          %2187 = vmatprep.subr.mxu0 0.0
          %2188 = vmatpush2.msra.mxu0 0.0
          %2189 = vmatprep.subr.mxu0 0.0
          %2190 = vmatpush2.msra.mxu0 0.0
          %2191 = vmatprep.subr.mxu0 0.0
          %2192 = vmatpush2.msra.mxu0 0.0
          %2193 = vmatprep.subr.mxu0 0.0
          %2194 = vmatpush2.msra.mxu0 0.0
          %2195 = vmatprep.subr.mxu0 0.0
          %2196 = vmatpush2.msra.mxu0 0.0
          %2197 = vmatprep.subr.mxu0 0.0
          %2198 = vmatpush2.msra.mxu0 0.0
          %2199 = vmatprep.subr.mxu0 0.0
          %2200 = vmatpush2.msra.mxu0 0.0
          %2201 = vmatprep.subr.mxu0 0.0
          %2202 = vmatpush2.msra.mxu0 0.0
          %2203 = vmatprep.subr.mxu0 0.0
          %2204 = vmatpush2.msra.mxu0 0.0
          %2205 = vmatprep.subr.mxu0 0.0
          %2206 = vmatpush2.msra.mxu0 0.0
          %2207 = vmatprep.subr.mxu0 0.0
          %2208 = vmatpush2.msra.mxu0 0.0
          %2209 = vmatprep.subr.mxu0 0.0
          %2210 = vmatpush2.msra.mxu0 0.0
          %2211 = vmatprep.subr.mxu0 0.0
          %2212 = vmatpush2.msra.mxu0 0.0
          %2213 = vmatprep.subr.mxu0 0.0
          %2214 = vmatpush2.msra.mxu0 0.0
          %2215 = vmatprep.subr.mxu0 0.0
          %2216 = vmatpush2.msra.mxu0 0.0
          %2217 = vmatprep.subr.mxu0 0.0
          %2218 = vmatpush2.msra.mxu0 0.0
          %2219 = vmatprep.mubr.f32.mxu0 0.0
          %2220 = vmatmul.mubr.f32.gmra.mxu0 %v2108
          %v2221 = vpop.f32.mrf.mxu0
          %v2222 = vadd.f32 0.0, %v2221
          %v2223 = vpop.f32.mrf.mxu0
          %2224 = vmatprep.mubr.f32.mxu0 0.0
          %2225 = vmatmul.mubr.f32.gmra.mxu0 %v2111
          %v2226 = vpop.f32.mrf.mxu0
          %v2227 = vadd.f32 0.0, %v2226
          %v2228 = vpop.f32.mrf.mxu0
          %2229 = vmatprep.mubr.f32.mxu0 0.0
          %2230 = vmatmul.mubr.f32.gmra.mxu0 %v2114
          %v2231 = vpop.f32.mrf.mxu0
          %v2232 = vadd.f32 0.0, %v2231
          %v2233 = vpop.f32.mrf.mxu0
          %2234 = vmatprep.mubr.f32.mxu0 0.0
          %2235 = vmatmul.mubr.f32.gmra.mxu0 %v2117
          %v2236 = vpop.f32.mrf.mxu0
          %v2237 = vadd.f32 0.0, %v2236
          %v2238 = vpop.f32.mrf.mxu0
          %2239 = vmatprep.mubr.f32.mxu0 0.0
          %2240 = vmatmul.mubr.f32.gmra.mxu0 %v2120
          %v2241 = vpop.f32.mrf.mxu0
          %v2242 = vadd.f32 0.0, %v2241
          %v2243 = vpop.f32.mrf.mxu0
          %2244 = vmatprep.mubr.f32.mxu0 0.0
          %2245 = vmatmul.mubr.f32.gmra.mxu0 %v2123
          %v2246 = vpop.f32.mrf.mxu0
          %v2247 = vadd.f32 0.0, %v2246
          %v2248 = vpop.f32.mrf.mxu0
          %2249 = vmatprep.mubr.f32.mxu0 0.0
          %2250 = vmatmul.mubr.f32.gmra.mxu0 %v2126
          %v2251 = vpop.f32.mrf.mxu0
          %v2252 = vadd.f32 0.0, %v2251
          %v2253 = vpop.f32.mrf.mxu0
          %2254 = vmatprep.mubr.f32.mxu0 0.0
          %2255 = vmatmul.mubr.f32.gmra.mxu0 %v2129
          %v2256 = vpop.f32.mrf.mxu0
          %v2257 = vadd.f32 0.0, %v2256
          %v2258 = vpop.f32.mrf.mxu0
          %2259 = vmatprep.mubr.f32.mxu0 0.0
          %2260 = vmatmul.mubr.f32.gmra.mxu0 %v2132
          %v2261 = vpop.f32.mrf.mxu0
          %v2262 = vadd.f32 0.0, %v2261
          %v2263 = vpop.f32.mrf.mxu0
          %2264 = vmatprep.mubr.f32.mxu0 0.0
          %2265 = vmatmul.mubr.f32.gmra.mxu0 %v2135
          %v2266 = vpop.f32.mrf.mxu0
          %v2267 = vadd.f32 0.0, %v2266
          %v2268 = vpop.f32.mrf.mxu0
          %2269 = vmatprep.mubr.f32.mxu0 0.0
          %2270 = vmatmul.mubr.f32.gmra.mxu0 %v2138
          %v2271 = vpop.f32.mrf.mxu0
          %v2272 = vadd.f32 0.0, %v2271
          %v2273 = vpop.f32.mrf.mxu0
          %2274 = vmatprep.mubr.f32.mxu0 0.0
          %2275 = vmatmul.mubr.f32.gmra.mxu0 %v2141
          %v2276 = vpop.f32.mrf.mxu0
          %v2277 = vadd.f32 0.0, %v2276
          %v2278 = vpop.f32.mrf.mxu0
          %2279 = vmatprep.mubr.f32.mxu0 0.0
          %2280 = vmatmul.mubr.f32.gmra.mxu0 %v2144
          %v2281 = vpop.f32.mrf.mxu0
          %v2282 = vadd.f32 0.0, %v2281
          %v2283 = vpop.f32.mrf.mxu0
          %2284 = vmatprep.mubr.f32.mxu0 0.0
          %2285 = vmatmul.mubr.f32.gmra.mxu0 %v2147
          %v2286 = vpop.f32.mrf.mxu0
          %v2287 = vadd.f32 0.0, %v2286
          %v2288 = vpop.f32.mrf.mxu0
          %2289 = vmatprep.mubr.f32.mxu0 0.0
          %2290 = vmatmul.mubr.f32.gmra.mxu0 %v2150
          %v2291 = vpop.f32.mrf.mxu0
          %v2292 = vadd.f32 0.0, %v2291
          %v2293 = vpop.f32.mrf.mxu0
          %2294 = vmatprep.mubr.f32.mxu0 0.0
          %2295 = vmatmul.mubr.f32.gmra.mxu0 %v2153
          %v2296 = vpop.f32.mrf.mxu0
          %v2297 = vadd.f32 0.0, %v2296
          %v2298 = vpop.f32.mrf.mxu0
          %2299 = vdwg.mxu0
          %v2300 = vmul.f32 %v2222, 0.14285715
          %v2301 = vmul.f32 %v2227, 0.14285715
          %v2302 = vmul.f32 %v2232, 0.14285715
          %v2303 = vmul.f32 %v2237, 0.14285715
          %v2304 = vmul.f32 %v2242, 0.14285715
          %v2305 = vmul.f32 %v2247, 0.14285715
          %v2306 = vmul.f32 %v2252, 0.14285715
          %v2307 = vmul.f32 %v2257, 0.14285715
          %v2308 = vmul.f32 %v2262, 0.14285715
          %v2309 = vmul.f32 %v2267, 0.14285715
          %v2310 = vmul.f32 %v2272, 0.14285715
          %v2311 = vmul.f32 %v2277, 0.14285715
          %v2312 = vmul.f32 %v2282, 0.14285715
          %v2313 = vmul.f32 %v2287, 0.14285715
          %v2314 = vmul.f32 %v2292, 0.14285715
          %v2315 = vmul.f32 %v2297, 0.14285715
          %2316 = vxpose.xlu0.b32.start [1/16] %v2008, 128
          %2317 = vxpose.xlu0.b32.cont [2/16] 0.0, 128
          %2318 = vxpose.xlu0.b32.cont [3/16] 0.0, 128
          %2319 = vxpose.xlu0.b32.cont [4/16] 0.0, 128
          %2320 = vxpose.xlu0.b32.cont [5/16] 0.0, 128
          %2321 = vxpose.xlu0.b32.cont [6/16] 0.0, 128
          %2322 = vxpose.xlu0.b32.cont [7/16] 0.0, 128
          %2323 = vxpose.xlu0.b32.cont [8/16] 0.0, 128
          %2324 = vxpose.xlu0.b32.cont [9/16] 0.0, 128
          %2325 = vxpose.xlu0.b32.cont [10/16] 0.0, 128
          %2326 = vxpose.xlu0.b32.cont [11/16] 0.0, 128
          %2327 = vxpose.xlu0.b32.cont [12/16] 0.0, 128
          %2328 = vxpose.xlu0.b32.cont [13/16] 0.0, 128
          %2329 = vxpose.xlu0.b32.cont [14/16] 0.0, 128
          %2330 = vxpose.xlu0.b32.cont [15/16] 0.0, 128
          %2331 = vxpose.xlu0.b32.end [16/16] 0.0, 128
          %v2332 = vpop.trf.xlu0
          %v2333 = vpop.trf.xlu0
          %v2334 = vpop.trf.xlu0
          %v2335 = vpop.trf.xlu0
          %v2336 = vpop.trf.xlu0
          %v2337 = vpop.trf.xlu0
          %v2338 = vpop.trf.xlu0
          %v2339 = vpop.trf.xlu0
          %v2340 = vpop.trf.xlu0
          %v2341 = vpop.trf.xlu0
          %v2342 = vpop.trf.xlu0
          %v2343 = vpop.trf.xlu0
          %v2344 = vpop.trf.xlu0
          %v2345 = vpop.trf.xlu0
          %v2346 = vpop.trf.xlu0
          %v2347 = vpop.trf.xlu0
          %v2349 = vsel %vm2106, %v2332, 0
          %v2352 = vsel %vm2106, %v2333, 0
          %v2355 = vsel %vm2106, %v2334, 0
          %v2358 = vsel %vm2106, %v2335, 0
          %v2361 = vsel %vm2106, %v2336, 0
          %v2364 = vsel %vm2106, %v2337, 0
          %v2367 = vsel %vm2106, %v2338, 0
          %v2370 = vsel %vm2106, %v2339, 0
          %v2373 = vsel %vm2106, %v2340, 0
          %v2376 = vsel %vm2106, %v2341, 0
          %v2379 = vsel %vm2106, %v2342, 0
          %v2382 = vsel %vm2106, %v2343, 0
          %v2385 = vsel %vm2106, %v2344, 0
          %v2388 = vsel %vm2106, %v2345, 0
          %v2391 = vsel %vm2106, %v2346, 0
          %v2394 = vsel %vm2106, %v2347, 0
          %2396 = vmatprep.subr.mxu0 0.0
          %2397 = vmatpush1.msra.mxu0 0.0
          %2398 = vmatprep.subr.mxu0 0.0
          %2399 = vmatpush1.msra.mxu0 0.0
          %2400 = vmatprep.subr.mxu0 0.0
          %2401 = vmatpush1.msra.mxu0 0.0
          %2402 = vmatprep.subr.mxu0 0.0
          %2403 = vmatpush1.msra.mxu0 0.0
          %2404 = vmatprep.subr.mxu0 0.0
          %2405 = vmatpush1.msra.mxu0 0.0
          %2406 = vmatprep.subr.mxu0 0.0
          %2407 = vmatpush1.msra.mxu0 0.0
          %2408 = vmatprep.subr.mxu0 0.0
          %2409 = vmatpush1.msra.mxu0 0.0
          %2410 = vmatprep.subr.mxu0 0.0
          %2411 = vmatpush1.msra.mxu0 0.0
          %2412 = vmatprep.subr.mxu0 0.0
          %2413 = vmatpush1.msra.mxu0 0.0
          %2414 = vmatprep.subr.mxu0 0.0
          %2415 = vmatpush1.msra.mxu0 0.0
          %2416 = vmatprep.subr.mxu0 0.0
          %2417 = vmatpush1.msra.mxu0 0.0
          %2418 = vmatprep.subr.mxu0 0.0
          %2419 = vmatpush1.msra.mxu0 0.0
          %2420 = vmatprep.subr.mxu0 0.0
          %2421 = vmatpush1.msra.mxu0 0.0
          %2422 = vmatprep.subr.mxu0 0.0
          %2423 = vmatpush1.msra.mxu0 0.0
          %2424 = vmatprep.subr.mxu0 0.0
          %2425 = vmatpush1.msra.mxu0 0.0
          %2426 = vmatprep.subr.mxu0 0.0
          %2427 = vmatpush1.msra.mxu0 %v2008
          %2428 = vmatprep.subr.mxu0 0.0
          %2429 = vmatpush2.msra.mxu0 0.0
          %2430 = vmatprep.subr.mxu0 0.0
          %2431 = vmatpush2.msra.mxu0 0.0
          %2432 = vmatprep.subr.mxu0 0.0
          %2433 = vmatpush2.msra.mxu0 0.0
          %2434 = vmatprep.subr.mxu0 0.0
          %2435 = vmatpush2.msra.mxu0 0.0
          %2436 = vmatprep.subr.mxu0 0.0
          %2437 = vmatpush2.msra.mxu0 0.0
          %2438 = vmatprep.subr.mxu0 0.0
          %2439 = vmatpush2.msra.mxu0 0.0
          %2440 = vmatprep.subr.mxu0 0.0
          %2441 = vmatpush2.msra.mxu0 0.0
          %2442 = vmatprep.subr.mxu0 0.0
          %2443 = vmatpush2.msra.mxu0 0.0
          %2444 = vmatprep.subr.mxu0 0.0
          %2445 = vmatpush2.msra.mxu0 0.0
          %2446 = vmatprep.subr.mxu0 0.0
          %2447 = vmatpush2.msra.mxu0 0.0
          %2448 = vmatprep.subr.mxu0 0.0
          %2449 = vmatpush2.msra.mxu0 0.0
          %2450 = vmatprep.subr.mxu0 0.0
          %2451 = vmatpush2.msra.mxu0 0.0
          %2452 = vmatprep.subr.mxu0 0.0
          %2453 = vmatpush2.msra.mxu0 0.0
          %2454 = vmatprep.subr.mxu0 0.0
          %2455 = vmatpush2.msra.mxu0 0.0
          %2456 = vmatprep.subr.mxu0 0.0
          %2457 = vmatpush2.msra.mxu0 0.0
          %2458 = vmatprep.subr.mxu0 0.0
          %2459 = vmatpush2.msra.mxu0 0.0
          %2460 = vmatprep.mubr.f32.mxu0 0.0
          %2461 = vmatmul.mubr.f32.gmra.mxu0 %v2349
          %v2462 = vpop.f32.mrf.mxu0
          %v2463 = vadd.f32 0.0, %v2462
          %v2464 = vpop.f32.mrf.mxu0
          %2465 = vmatprep.mubr.f32.mxu0 0.0
          %2466 = vmatmul.mubr.f32.gmra.mxu0 %v2352
          %v2467 = vpop.f32.mrf.mxu0
          %v2468 = vadd.f32 0.0, %v2467
          %v2469 = vpop.f32.mrf.mxu0
          %2470 = vmatprep.mubr.f32.mxu0 0.0
          %2471 = vmatmul.mubr.f32.gmra.mxu0 %v2355
          %v2472 = vpop.f32.mrf.mxu0
          %v2473 = vadd.f32 0.0, %v2472
          %v2474 = vpop.f32.mrf.mxu0
          %2475 = vmatprep.mubr.f32.mxu0 0.0
          %2476 = vmatmul.mubr.f32.gmra.mxu0 %v2358
          %v2477 = vpop.f32.mrf.mxu0
          %v2478 = vadd.f32 0.0, %v2477
          %v2479 = vpop.f32.mrf.mxu0
          %2480 = vmatprep.mubr.f32.mxu0 0.0
          %2481 = vmatmul.mubr.f32.gmra.mxu0 %v2361
          %v2482 = vpop.f32.mrf.mxu0
          %v2483 = vadd.f32 0.0, %v2482
          %v2484 = vpop.f32.mrf.mxu0
          %2485 = vmatprep.mubr.f32.mxu0 0.0
          %2486 = vmatmul.mubr.f32.gmra.mxu0 %v2364
          %v2487 = vpop.f32.mrf.mxu0
          %v2488 = vadd.f32 0.0, %v2487
          %v2489 = vpop.f32.mrf.mxu0
          %2490 = vmatprep.mubr.f32.mxu0 0.0
          %2491 = vmatmul.mubr.f32.gmra.mxu0 %v2367
          %v2492 = vpop.f32.mrf.mxu0
          %v2493 = vadd.f32 0.0, %v2492
          %v2494 = vpop.f32.mrf.mxu0
          %2495 = vmatprep.mubr.f32.mxu0 0.0
          %2496 = vmatmul.mubr.f32.gmra.mxu0 %v2370
          %v2497 = vpop.f32.mrf.mxu0
          %v2498 = vadd.f32 0.0, %v2497
          %v2499 = vpop.f32.mrf.mxu0
          %2500 = vmatprep.mubr.f32.mxu0 0.0
          %2501 = vmatmul.mubr.f32.gmra.mxu0 %v2373
          %v2502 = vpop.f32.mrf.mxu0
          %v2503 = vadd.f32 0.0, %v2502
          %v2504 = vpop.f32.mrf.mxu0
          %2505 = vmatprep.mubr.f32.mxu0 0.0
          %2506 = vmatmul.mubr.f32.gmra.mxu0 %v2376
          %v2507 = vpop.f32.mrf.mxu0
          %v2508 = vadd.f32 0.0, %v2507
          %v2509 = vpop.f32.mrf.mxu0
          %2510 = vmatprep.mubr.f32.mxu0 0.0
          %2511 = vmatmul.mubr.f32.gmra.mxu0 %v2379
          %v2512 = vpop.f32.mrf.mxu0
          %v2513 = vadd.f32 0.0, %v2512
          %v2514 = vpop.f32.mrf.mxu0
          %2515 = vmatprep.mubr.f32.mxu0 0.0
          %2516 = vmatmul.mubr.f32.gmra.mxu0 %v2382
          %v2517 = vpop.f32.mrf.mxu0
          %v2518 = vadd.f32 0.0, %v2517
          %v2519 = vpop.f32.mrf.mxu0
          %2520 = vmatprep.mubr.f32.mxu0 0.0
          %2521 = vmatmul.mubr.f32.gmra.mxu0 %v2385
          %v2522 = vpop.f32.mrf.mxu0
          %v2523 = vadd.f32 0.0, %v2522
          %v2524 = vpop.f32.mrf.mxu0
          %2525 = vmatprep.mubr.f32.mxu0 0.0
          %2526 = vmatmul.mubr.f32.gmra.mxu0 %v2388
          %v2527 = vpop.f32.mrf.mxu0
          %v2528 = vadd.f32 0.0, %v2527
          %v2529 = vpop.f32.mrf.mxu0
          %2530 = vmatprep.mubr.f32.mxu0 0.0
          %2531 = vmatmul.mubr.f32.gmra.mxu0 %v2391
          %v2532 = vpop.f32.mrf.mxu0
          %v2533 = vadd.f32 0.0, %v2532
          %v2534 = vpop.f32.mrf.mxu0
          %2535 = vmatprep.mubr.f32.mxu0 0.0
          %2536 = vmatmul.mubr.f32.gmra.mxu0 %v2394
          %v2537 = vpop.f32.mrf.mxu0
          %v2538 = vadd.f32 0.0, %v2537
          %v2539 = vpop.f32.mrf.mxu0
          %2540 = vdwg.mxu0
          %v2541 = vmul.f32 %v2463, 0.14285715
          %v2542 = vmul.f32 %v2468, 0.14285715
          %v2543 = vmul.f32 %v2473, 0.14285715
          %v2544 = vmul.f32 %v2478, 0.14285715
          %v2545 = vmul.f32 %v2483, 0.14285715
          %v2546 = vmul.f32 %v2488, 0.14285715
          %v2547 = vmul.f32 %v2493, 0.14285715
          %v2548 = vmul.f32 %v2498, 0.14285715
          %v2549 = vmul.f32 %v2503, 0.14285715
          %v2550 = vmul.f32 %v2508, 0.14285715
          %v2551 = vmul.f32 %v2513, 0.14285715
          %v2552 = vmul.f32 %v2518, 0.14285715
          %v2553 = vmul.f32 %v2523, 0.14285715
          %v2554 = vmul.f32 %v2528, 0.14285715
          %v2555 = vmul.f32 %v2533, 0.14285715
          %v2556 = vmul.f32 %v2538, 0.14285715
          %v2557 = vadd.s32 %v1381, 8
          %v2558 = vadd.s32 %v1381, 16
          %v2559 = vadd.s32 %v1381, 24
          %v2560 = vadd.s32 %v1381, 32
          %v2561 = vadd.s32 %v1381, 40
          %v2562 = vadd.s32 %v1381, 48
          %v2563 = vadd.s32 %v1381, 56
          %v2564 = vadd.s32 %v1381, 64
          %v2565 = vadd.s32 %v1381, 72
          %v2566 = vadd.s32 %v1381, 80
          %v2567 = vadd.s32 %v1381, 88
          %v2568 = vadd.s32 %v1381, 96
          %v2569 = vadd.s32 %v1381, 104
          %v2570 = vadd.s32 %v1381, 112
          %v2571 = vadd.s32 %v1381, 120
          %v2572 = vlaneseq
          %v2573 = vand.u32 %v2572, 127
          %vm2574 = vcmp.ne.s32.totalorder %v1381, %v2573
          %vm2575 = vcmp.ne.s32.totalorder %v2557, %v2573
          %vm2576 = vcmp.ne.s32.totalorder %v2558, %v2573
          %vm2577 = vcmp.ne.s32.totalorder %v2559, %v2573
          %vm2578 = vcmp.ne.s32.totalorder %v2560, %v2573
          %vm2579 = vcmp.ne.s32.totalorder %v2561, %v2573
          %vm2580 = vcmp.ne.s32.totalorder %v2562, %v2573
          %vm2581 = vcmp.ne.s32.totalorder %v2563, %v2573
          %vm2582 = vcmp.ne.s32.totalorder %v2564, %v2573
          %vm2583 = vcmp.ne.s32.totalorder %v2565, %v2573
          %vm2584 = vcmp.ne.s32.totalorder %v2566, %v2573
          %vm2585 = vcmp.ne.s32.totalorder %v2567, %v2573
          %vm2586 = vcmp.ne.s32.totalorder %v2568, %v2573
          %vm2587 = vcmp.ne.s32.totalorder %v2569, %v2573
          %vm2588 = vcmp.ne.s32.totalorder %v2570, %v2573
          %vm2589 = vcmp.ne.s32.totalorder %v2571, %v2573
          %v2590 = vsel %vm2574, 1, 0
          %v2591 = vsel %vm2575, 1, 0
          %v2592 = vsel %vm2576, 1, 0
          %v2593 = vsel %vm2577, 1, 0
          %v2594 = vsel %vm2578, 1, 0
          %v2595 = vsel %vm2579, 1, 0
          %v2596 = vsel %vm2580, 1, 0
          %v2597 = vsel %vm2581, 1, 0
          %v2598 = vsel %vm2582, 1, 0
          %v2599 = vsel %vm2583, 1, 0
          %v2600 = vsel %vm2584, 1, 0
          %v2601 = vsel %vm2585, 1, 0
          %v2602 = vsel %vm2586, 1, 0
          %v2603 = vsel %vm2587, 1, 0
          %v2604 = vsel %vm2588, 1, 0
          %v2605 = vsel %vm2589, 1, 0
          %v2606 = vcvt.s32.f32 %v2590
          %v2607 = vcvt.s32.f32 %v2591
          %v2608 = vcvt.s32.f32 %v2592
          %v2609 = vcvt.s32.f32 %v2593
          %v2610 = vcvt.s32.f32 %v2594
          %v2611 = vcvt.s32.f32 %v2595
          %v2612 = vcvt.s32.f32 %v2596
          %v2613 = vcvt.s32.f32 %v2597
          %v2614 = vcvt.s32.f32 %v2598
          %v2615 = vcvt.s32.f32 %v2599
          %v2616 = vcvt.s32.f32 %v2600
          %v2617 = vcvt.s32.f32 %v2601
          %v2618 = vcvt.s32.f32 %v2602
          %v2619 = vcvt.s32.f32 %v2603
          %v2620 = vcvt.s32.f32 %v2604
          %v2621 = vcvt.s32.f32 %v2605
          %v2622 = vmul.f32 %v2300, %v2606
          %v2623 = vmul.f32 %v2301, %v2607
          %v2624 = vmul.f32 %v2302, %v2608
          %v2625 = vmul.f32 %v2303, %v2609
          %v2626 = vmul.f32 %v2304, %v2610
          %v2627 = vmul.f32 %v2305, %v2611
          %v2628 = vmul.f32 %v2306, %v2612
          %v2629 = vmul.f32 %v2307, %v2613
          %v2630 = vmul.f32 %v2308, %v2614
          %v2631 = vmul.f32 %v2309, %v2615
          %v2632 = vmul.f32 %v2310, %v2616
          %v2633 = vmul.f32 %v2311, %v2617
          %v2634 = vmul.f32 %v2312, %v2618
          %v2635 = vmul.f32 %v2313, %v2619
          %v2636 = vmul.f32 %v2314, %v2620
          %v2637 = vmul.f32 %v2315, %v2621
          %v2638 = vmul.f32 %v2622, %v2622
          %v2639 = vmul.f32 %v2623, %v2623
          %v2640 = vmul.f32 %v2624, %v2624
          %v2641 = vmul.f32 %v2625, %v2625
          %v2642 = vmul.f32 %v2626, %v2626
          %v2643 = vmul.f32 %v2627, %v2627
          %v2644 = vmul.f32 %v2628, %v2628
          %v2645 = vmul.f32 %v2629, %v2629
          %v2646 = vmul.f32 %v2630, %v2630
          %v2647 = vmul.f32 %v2631, %v2631
          %v2648 = vmul.f32 %v2632, %v2632
          %v2649 = vmul.f32 %v2633, %v2633
          %v2650 = vmul.f32 %v2634, %v2634
          %v2651 = vmul.f32 %v2635, %v2635
          %v2652 = vmul.f32 %v2636, %v2636
          %v2653 = vmul.f32 %v2637, %v2637
          %v2654 = vadd.f32 %v2638, %v2639
          %v2655 = vadd.f32 %v2654, %v2640
          %v2656 = vadd.f32 %v2655, %v2641
          %v2657 = vadd.f32 %v2656, %v2642
          %v2658 = vadd.f32 %v2657, %v2643
          %v2659 = vadd.f32 %v2658, %v2644
          %v2660 = vadd.f32 %v2659, %v2645
          %v2661 = vadd.f32 %v2660, %v2646
          %v2662 = vadd.f32 %v2661, %v2647
          %v2663 = vadd.f32 %v2662, %v2648
          %v2664 = vadd.f32 %v2663, %v2649
          %v2665 = vadd.f32 %v2664, %v2650
          %v2666 = vadd.f32 %v2665, %v2651
          %v2667 = vadd.f32 %v2666, %v2652
          %v2668 = vadd.f32 %v2667, %v2653
          %2669 = vadd.xlane.f32.xlu0 %v2668
          %v2670 = vpop.xlane.xlu0 %2669
          %v2671 = vrot.slane %v2670, 4
          %v2672 = vadd.f32 %v2670, %v2671
          %v2673 = vrot.slane %v2672, 2
          %v2674 = vadd.f32 %v2672, %v2673
          %v2675 = vrot.slane %v2674, 1
          %v2676 = vadd.f32 %v2674, %v2675
          %s2677 = vtos %v2676
          %v2678 = vmul.f32 %v2541, %v2606
          %v2679 = vmul.f32 %v2542, %v2607
          %v2680 = vmul.f32 %v2543, %v2608
          %v2681 = vmul.f32 %v2544, %v2609
          %v2682 = vmul.f32 %v2545, %v2610
          %v2683 = vmul.f32 %v2546, %v2611
          %v2684 = vmul.f32 %v2547, %v2612
          %v2685 = vmul.f32 %v2548, %v2613
          %v2686 = vmul.f32 %v2549, %v2614
          %v2687 = vmul.f32 %v2550, %v2615
          %v2688 = vmul.f32 %v2551, %v2616
          %v2689 = vmul.f32 %v2552, %v2617
          %v2690 = vmul.f32 %v2553, %v2618
          %v2691 = vmul.f32 %v2554, %v2619
          %v2692 = vmul.f32 %v2555, %v2620
          %v2693 = vmul.f32 %v2556, %v2621
          %v2694 = vmul.f32 %v2678, %v2678
          %v2695 = vmul.f32 %v2679, %v2679
          %v2696 = vmul.f32 %v2680, %v2680
          %v2697 = vmul.f32 %v2681, %v2681
          %v2698 = vmul.f32 %v2682, %v2682
          %v2699 = vmul.f32 %v2683, %v2683
          %v2700 = vmul.f32 %v2684, %v2684
          %v2701 = vmul.f32 %v2685, %v2685
          %v2702 = vmul.f32 %v2686, %v2686
          %v2703 = vmul.f32 %v2687, %v2687
          %v2704 = vmul.f32 %v2688, %v2688
          %v2705 = vmul.f32 %v2689, %v2689
          %v2706 = vmul.f32 %v2690, %v2690
          %v2707 = vmul.f32 %v2691, %v2691
          %v2708 = vmul.f32 %v2692, %v2692
          %v2709 = vmul.f32 %v2693, %v2693
          %v2710 = vadd.f32 %v2694, %v2695
          %v2711 = vadd.f32 %v2710, %v2696
          %v2712 = vadd.f32 %v2711, %v2697
          %v2713 = vadd.f32 %v2712, %v2698
          %v2714 = vadd.f32 %v2713, %v2699
          %v2715 = vadd.f32 %v2714, %v2700
          %v2716 = vadd.f32 %v2715, %v2701
          %v2717 = vadd.f32 %v2716, %v2702
          %v2718 = vadd.f32 %v2717, %v2703
          %v2719 = vadd.f32 %v2718, %v2704
          %v2720 = vadd.f32 %v2719, %v2705
          %v2721 = vadd.f32 %v2720, %v2706
          %v2722 = vadd.f32 %v2721, %v2707
          %v2723 = vadd.f32 %v2722, %v2708
          %v2724 = vadd.f32 %v2723, %v2709
          %2725 = vadd.xlane.f32.xlu0 %v2724
          %v2726 = vpop.xlane.xlu0 %2725
          %v2727 = vrot.slane %v2726, 4
          %v2728 = vadd.f32 %v2726, %v2727
          %v2729 = vrot.slane %v2728, 2
          %v2730 = vadd.f32 %v2728, %v2729
          %v2731 = vrot.slane %v2730, 1
          %v2732 = vadd.f32 %v2730, %v2731
          %s2733 = vtos %v2732
          %s2734 = sadd.f32 %s2677, %s2733
          %v2735 = vrcp.pop 128.0
          %s2736 = vtos %v2735
          %s2737 = smul.f32 %s2734, %s2736
          %s2738 = smul.f32 %s1992, 25.0
          %s2739 = smul.f32 %s2073, 25.0
          %s2740 = sadd.f32 %s2738, %s2739
          %s2741 = sadd.f32 %s2740, %s2737
          %s2742 = scalar_lea.smem [#allocation4], 0
          %2743 = sst [smem:[%s2742]] %s2741
        $region72: #{vicreg_forward.1} parent=59 // pred_fallthru
          _
        // Predicated region
        $region73: #{vicreg_forward.1} parent=59 // pred_check
          %p2744 = pneg %p274
        $region74: #{vicreg_forward.1} parent=59 // pred_check_branch
          %2746 = sbr.rel (%p2744) target = $region76
        $region75: #{vicreg_forward.1} parent=59 // pred_region
          %s2748 = ssub.s32 16, 16
          %2749 = vsyncadd [#allocation5], %s2748
          %2752 = dma.smem_to_hbm [#allocation4], 16, %s10, [#allocation5]
        $region76: #{vicreg_forward.1} parent=59 // pred_fallthru
          _
        // Predicated region
        $region77: #{vicreg_forward.1} parent=59 // pred_check
          %p2753 = pneg %p274
        $region78: #{vicreg_forward.1} parent=59 // pred_check_branch
          %2755 = sbr.rel (%p2753) target = $region80
        $region79: #{vicreg_forward.1} parent=59 // pred_region
          %2756 = dma.done [#allocation5], 16
        $region80: #{vicreg_forward.1} parent=59 // pred_fallthru
          _
        %2757 = sfence
      $region60: #{vicreg_forward.1} parent=5 // pred_fallthru
        _
      %p2758 = scmp.le.s32.totalorder 2, %s17
      // Predicated region
      $region81: #{vicreg_forward.1} parent=5 // pred_check
        %p2759 = pneg %p2758
      $region82: #{vicreg_forward.1} parent=5 // pred_check_branch
        %2761 = sbr.rel (%p2759) target = $region84
      $region83: #{vicreg_forward.1} parent=5 // pred_region
        %s2762 = ssub.s32 %s17, 2
      $region84: #{vicreg_forward.1} parent=5 // pred_fallthru
        _
    $region6: #{vicreg_forward.1} parent=1 // loop_footer
      %s21 = sadd.s32 1, %s17
    $region7: #{vicreg_forward.1} parent=1 // loop_footer_branch
      %16 = sbr.rel target = $region3
    $region8: #{vicreg_forward.1} parent=1 // loop_exit
      _
    %2763 = vsyncpa [#allocation5], 1
    %s2764 = scalar_lea.sflag [#allocation5], 1
    %2765 = vsyncpa %s2764, 1

</llo_original>
